<compile_context>
chip_gen: v7x
topology: tpu7x:2x2x1
jax: 0.10.0
libtpu: 0.0.40
codegen_flags: <defaults>
</compile_context>

<pallas_src>
import functools

import jax
import jax.numpy as jnp
from jax.experimental import pallas as pl
from jax.experimental.pallas import tpu as pltpu


def _round_up(x, m):
    return (x + m - 1) // m * m


# ------------------------- Pallas kernel -------------------------

def _conv_bias_relu_kernel(p_ref, w_ref, b_ref, o_ref):
    # bf16 x bf16 -> f32 accumulate on the MXU, bias + ReLU on the VPU (free
    # under MXU/DMA slack), cast back to bf16 for the lane-dense store.
    acc = jnp.dot(p_ref[...], w_ref[...], preferred_element_type=jnp.float32)
    y = jnp.maximum(acc + b_ref[...], 0.0)
    o_ref[...] = y.astype(o_ref.dtype)


def _choose_row_tile(M, max_tm=1024):
    """Pick (tm, M_pad): tm is a sublane (8) multiple, M_pad = grid*tm >= M.

    Single grid step when everything fits in one tile (overhead-bound regime);
    otherwise split M as evenly as possible to avoid padded-row waste while
    keeping tiles big enough to hide the HBM DMA behind the MXU.
    """
    M8 = _round_up(max(M, 1), 8)
    if M8 <= max_tm:
        return M8, M8
    g = pl.cdiv(M8, max_tm)
    tm = _round_up(-(-M8 // g), 8)
    return tm, tm * g


def conv_bias_relu(patches, w, b):
    """patches: (M, K_pad) bf16, w: (K_pad, C_pad) bf16, b: (1, C_pad) f32.

    K_pad / C_pad are already 128-multiples.  Returns (M_pad, C_pad) bf16; the
    caller slices off padded rows / channels.
    """
    M, K = patches.shape
    C = w.shape[1]

    tm, M_pad = _choose_row_tile(M)
    if M_pad != M:
        patches = jnp.pad(patches, ((0, M_pad - M), (0, 0)))

    grid = (M_pad // tm,)
    flops = 2 * M_pad * K * C
    bytes_accessed = (M_pad * K * 2) + (K * C * 2) + (C * 4) + (M_pad * C * 2)

    return pl.pallas_call(
        _conv_bias_relu_kernel,
        out_shape=jax.ShapeDtypeStruct((M_pad, C), jnp.bfloat16),
        grid=grid,
        in_specs=[
            pl.BlockSpec((tm, K), lambda i: (i, 0)),   # patch row-tile (pipelined)
            pl.BlockSpec((K, C), lambda i: (0, 0)),    # weights: same block -> VMEM-resident
            pl.BlockSpec((1, C), lambda i: (0, 0)),    # bias: same block -> VMEM-resident
        ],
        out_specs=pl.BlockSpec((tm, C), lambda i: (i, 0)),
        compiler_params=pltpu.CompilerParams(
            dimension_semantics=("parallel",),         # megacore sharding on v7x
            vmem_limit_bytes=32 * 1024 * 1024,         # safe on v5e/v6e/v7x
        ),
        cost_estimate=pl.CostEstimate(
            flops=flops, transcendentals=0, bytes_accessed=bytes_accessed),
    )(patches, w, b)


# ------------------------- glue (plain JAX) -------------------------

def im2col(x_nhwc, k, stride=1, pad=0):
    """Extract conv patches. Returns (N*OH*OW, k*k*C), N, OH, OW."""
    N, H, W, C = x_nhwc.shape
    if pad:
        x_nhwc = jnp.pad(x_nhwc, ((0, 0), (pad, pad), (pad, pad), (0, 0)))
    OH = (H + 2 * pad - k) // stride + 1
    OW = (W + 2 * pad - k) // stride + 1
    cols = []
    for i in range(k):
        for j in range(k):
            cols.append(x_nhwc[:, i:i + stride * OH:stride, j:j + stride * OW:stride, :])
    patches = jnp.stack(cols, axis=3)                  # (N, OH, OW, k*k, C)
    return patches.reshape(N * OH * OW, k * k * C), N, OH, OW


def maxpool2x2(x_nhwc):
    N, H, W, C = x_nhwc.shape
    return x_nhwc.reshape(N, H // 2, 2, W // 2, 2, C).max(axis=(2, 4))


def layer_cfgs(ndf):
    # (cin, cout, kernel, pool_after)
    return [
        (3,   ndf,     5, True),   # Conv2d(3, ndf, 5, 1, 0) + ReLU + MaxPool(2,2)
        (ndf, ndf,     5, True),   # Conv2d(ndf, ndf, 5, 1, 0) + ReLU + MaxPool(2,2)
        (ndf, 2 * ndf, 5, False),  # Conv2d(ndf, 2*ndf, 5, 1, 0) + ReLU
    ]


def init_params(key, ndf):
    """Weights stored pre-padded: (K_pad, C_pad) bf16, bias (1, C_pad) f32.

    Padded rows/cols are zero, so they contribute nothing to the matmul and the
    padded output channels stay at relu(0) = 0 until sliced off.
    """
    params = []
    for (cin, cout, k, _) in layer_cfgs(ndf):
        key, kw, kb = jax.random.split(key, 3)
        K = k * k * cin
        bound = 1.0 / (K ** 0.5)                 # PyTorch Conv2d default init range
        w = jax.random.uniform(kw, (K, cout), jnp.float32, -bound, bound)
        b = jax.random.uniform(kb, (cout,), jnp.float32, -bound, bound)
        K_pad = _round_up(K, 128)
        C_pad = _round_up(cout, 128)
        w_p = jnp.zeros((K_pad, C_pad), jnp.float32).at[:K, :cout].set(w)
        b_p = jnp.zeros((1, C_pad), jnp.float32).at[0, :cout].set(b)
        params.append((w_p.astype(jnp.bfloat16), b_p))
    return params


def mixer_forward(x_nchw, params, ndf, use_pallas=True):
    # NCHW -> NHWC, bf16 activations (halves HBM traffic between layers).
    x = jnp.transpose(x_nchw, (0, 2, 3, 1)).astype(jnp.bfloat16)
    cfgs = layer_cfgs(ndf)

    for (w, b), (_, cout, k, pool) in zip(params, cfgs):
        patches, N, OH, OW = im2col(x, k)
        K = patches.shape[1]
        K_pad = w.shape[0]
        if K_pad != K:
            patches = jnp.pad(patches, ((0, 0), (0, K_pad - K)))
        if use_pallas:
            out = conv_bias_relu(patches, w, b)
        else:  # pure-JAX reference (same bf16-in / f32-accumulate math)
            acc = jnp.dot(patches, w, preferred_element_type=jnp.float32) + b
            out = jnp.maximum(acc, 0.0).astype(jnp.bfloat16)
        out = out[:N * OH * OW, :cout]           # drop padded rows / channels
        x = out.reshape(N, OH, OW, cout)
        if pool:
            x = maxpool2x2(x)

    # output.view(-1, 2*ndf): with the module's intended 3x32x32 input the final
    # spatial size is 1x1, so the NHWC reshape is identical to PyTorch's NCHW view.
    return x.reshape(-1, 2 * ndf).astype(jnp.float32)


# ------------------------- main -------------------------

if __name__ == "__main__":
    ndf = 16
    key = jax.random.PRNGKey(0)
    kx, kp = jax.random.split(key)

    # 3x32x32 input: 32 -conv5-> 28 -pool-> 14 -conv5-> 10 -pool-> 5 -conv5-> 1
    x = jax.random.normal(kx, (2, 3, 32, 32), dtype=jnp.float32)   # NCHW like PyTorch
    params = init_params(kp, ndf)

    run_pallas = jax.jit(functools.partial(mixer_forward, ndf=ndf, use_pallas=True))
    run_ref = jax.jit(functools.partial(mixer_forward, ndf=ndf, use_pallas=False))

    out = jax.block_until_ready(run_pallas(x, params))
    ref = jax.block_until_ready(run_ref(x, params))

    assert out.shape == (2, 2 * ndf), out.shape
    assert bool(jnp.allclose(out, ref, atol=1e-2, rtol=1e-2)), "mismatch vs JAX reference"
    print("KERNEL_OK")
</pallas_src>

<mosaic_0001>
module attributes {stable_mosaic.version = 11 : i64} {
  func.func @_conv_bias_relu_kernel(%arg0: i32, %arg1: memref<784x128xbf16, #tpu.memory_space<vmem>>, %arg2: memref<128x128xbf16, #tpu.memory_space<vmem>>, %arg3: memref<1x128xf32, #tpu.memory_space<vmem>>, %arg4: memref<784x128xbf16, #tpu.memory_space<vmem>>) attributes {dimension_semantics = [#tpu.dimension_semantics<parallel>], iteration_bounds = array<i64: 2>, scalar_prefetch = 0 : i64, scratch_operands = 0 : i64, tpu.core_type = #tpu.core_type<tc>, window_params = [{transform_indices = @transform_0, window_bounds = array<i64: 784, 128>}, {pipeline_mode = #tpu.pipeline_mode<synchronous>, transform_indices = @transform_1, window_bounds = array<i64: 128, 128>}, {pipeline_mode = #tpu.pipeline_mode<synchronous>, transform_indices = @transform_2, window_bounds = array<i64: 1, 128>}, {transform_indices = @transform_3, window_bounds = array<i64: 784, 128>}]} {
    %c0 = arith.constant 0 : index
    %c0_0 = arith.constant 0 : index
    %0 = vector.load %arg1[%c0, %c0_0] : memref<784x128xbf16, #tpu.memory_space<vmem>>, vector<784x128xbf16>
    %c0_1 = arith.constant 0 : index
    %c0_2 = arith.constant 0 : index
    %1 = vector.load %arg2[%c0_1, %c0_2] : memref<128x128xbf16, #tpu.memory_space<vmem>>, vector<128x128xbf16>
    %cst = arith.constant dense<0.000000e+00> : vector<784x128xf32>
    %2 = tpu.matmul %0, %1, %cst {dimension_numbers = #tpu.dot_dimension_numbers<[1], [0], [0], [1], [0, 0, 1, 1], [], []>} : vector<784x128xbf16>, vector<128x128xbf16>, vector<784x128xf32> -> vector<784x128xf32>
    %c0_3 = arith.constant 0 : index
    %c0_4 = arith.constant 0 : index
    %3 = vector.load %arg3[%c0_3, %c0_4] : memref<1x128xf32, #tpu.memory_space<vmem>>, vector<1x128xf32>
    %4 = vector.broadcast %3 : vector<1x128xf32> to vector<784x128xf32>
    %5 = arith.addf %2, %4 : vector<784x128xf32>
    %cst_5 = arith.constant 0.000000e+00 : f32
    %6 = vector.broadcast %cst_5 : f32 to vector<784x128xf32>
    %7 = arith.maximumf %5, %6 : vector<784x128xf32>
    %8 = arith.truncf %7 : vector<784x128xf32> to vector<784x128xbf16>
    %c0_6 = arith.constant 0 : index
    %c0_7 = arith.constant 0 : index
    %9 = vector.load %arg4[%c0_6, %c0_7] : memref<784x128xbf16, #tpu.memory_space<vmem>>, vector<784x128xbf16>
    tpu.vector_store %arg4[%c0_6, %c0_7], %8 {strides = array<i32>} : memref<784x128xbf16, #tpu.memory_space<vmem>>, vector<784x128xbf16>,
    return
  }
  func.func @transform_0(%arg0: i32) -> (i32, i32) {
    %c0_i32 = arith.constant 0 : i32
    %c0_i32_0 = arith.constant 0 : i32
    return %arg0, %c0_i32 : i32, i32
  }
  func.func @transform_1(%arg0: i32) -> (i32, i32) {
    %c0_i32 = arith.constant 0 : i32
    %c0_i32_0 = arith.constant 0 : i32
    %c0_i32_1 = arith.constant 0 : i32
    return %c0_i32, %c0_i32_0 : i32, i32
  }
  func.func @transform_2(%arg0: i32) -> (i32, i32) {
    %c0_i32 = arith.constant 0 : i32
    %c0_i32_0 = arith.constant 0 : i32
    %c0_i32_1 = arith.constant 0 : i32
    return %c0_i32, %c0_i32_0 : i32, i32
  }
  func.func @transform_3(%arg0: i32) -> (i32, i32) {
    %c0_i32 = arith.constant 0 : i32
    %c0_i32_0 = arith.constant 0 : i32
    return %arg0, %c0_i32 : i32, i32
  }
}

module attributes {stable_mosaic.version = 11 : i64} {
  func.func @_conv_bias_relu_kernel(%arg0: i32, %arg1: memref<200x512xbf16, #tpu.memory_space<vmem>>, %arg2: memref<512x128xbf16, #tpu.memory_space<vmem>>, %arg3: memref<1x128xf32, #tpu.memory_space<vmem>>, %arg4: memref<200x128xbf16, #tpu.memory_space<vmem>>) attributes {dimension_semantics = [#tpu.dimension_semantics<parallel>], iteration_bounds = array<i64: 1>, scalar_prefetch = 0 : i64, scratch_operands = 0 : i64, tpu.core_type = #tpu.core_type<tc>, window_params = [{transform_indices = @transform_0, window_bounds = array<i64: 200, 512>}, {pipeline_mode = #tpu.pipeline_mode<synchronous>, transform_indices = @transform_1, window_bounds = array<i64: 512, 128>}, {pipeline_mode = #tpu.pipeline_mode<synchronous>, transform_indices = @transform_2, window_bounds = array<i64: 1, 128>}, {transform_indices = @transform_3, window_bounds = array<i64: 200, 128>}]} {
    %c0 = arith.constant 0 : index
    %c0_0 = arith.constant 0 : index
    %0 = vector.load %arg1[%c0, %c0_0] : memref<200x512xbf16, #tpu.memory_space<vmem>>, vector<200x512xbf16>
    %c0_1 = arith.constant 0 : index
    %c0_2 = arith.constant 0 : index
    %1 = vector.load %arg2[%c0_1, %c0_2] : memref<512x128xbf16, #tpu.memory_space<vmem>>, vector<512x128xbf16>
    %cst = arith.constant dense<0.000000e+00> : vector<200x128xf32>
    %2 = tpu.matmul %0, %1, %cst {dimension_numbers = #tpu.dot_dimension_numbers<[1], [0], [0], [1], [0, 0, 1, 1], [], []>} : vector<200x512xbf16>, vector<512x128xbf16>, vector<200x128xf32> -> vector<200x128xf32>
    %c0_3 = arith.constant 0 : index
    %c0_4 = arith.constant 0 : index
    %3 = vector.load %arg3[%c0_3, %c0_4] : memref<1x128xf32, #tpu.memory_space<vmem>>, vector<1x128xf32>
    %4 = vector.broadcast %3 : vector<1x128xf32> to vector<200x128xf32>
    %5 = arith.addf %2, %4 : vector<200x128xf32>
    %cst_5 = arith.constant 0.000000e+00 : f32
    %6 = vector.broadcast %cst_5 : f32 to vector<200x128xf32>
    %7 = arith.maximumf %5, %6 : vector<200x128xf32>
    %8 = arith.truncf %7 : vector<200x128xf32> to vector<200x128xbf16>
    %c0_6 = arith.constant 0 : index
    %c0_7 = arith.constant 0 : index
    %9 = vector.load %arg4[%c0_6, %c0_7] : memref<200x128xbf16, #tpu.memory_space<vmem>>, vector<200x128xbf16>
    tpu.vector_store %arg4[%c0_6, %c0_7], %8 {strides = array<i32>} : memref<200x128xbf16, #tpu.memory_space<vmem>>, vector<200x128xbf16>,
    return
  }
  func.func @transform_0(%arg0: i32) -> (i32, i32) {
    %c0_i32 = arith.constant 0 : i32
    %c0_i32_0 = arith.constant 0 : i32
    return %arg0, %c0_i32 : i32, i32
  }
  func.func @transform_1(%arg0: i32) -> (i32, i32) {
    %c0_i32 = arith.constant 0 : i32
    %c0_i32_0 = arith.constant 0 : i32
    %c0_i32_1 = arith.constant 0 : i32
    return %c0_i32, %c0_i32_0 : i32, i32
  }
  func.func @transform_2(%arg0: i32) -> (i32, i32) {
    %c0_i32 = arith.constant 0 : i32
    %c0_i32_0 = arith.constant 0 : i32
    %c0_i32_1 = arith.constant 0 : i32
    return %c0_i32, %c0_i32_0 : i32, i32
  }
  func.func @transform_3(%arg0: i32) -> (i32, i32) {
    %c0_i32 = arith.constant 0 : i32
    %c0_i32_0 = arith.constant 0 : i32
    return %arg0, %c0_i32 : i32, i32
  }
}

module attributes {stable_mosaic.version = 11 : i64} {
  func.func @_conv_bias_relu_kernel(%arg0: i32, %arg1: memref<8x512xbf16, #tpu.memory_space<vmem>>, %arg2: memref<512x128xbf16, #tpu.memory_space<vmem>>, %arg3: memref<1x128xf32, #tpu.memory_space<vmem>>, %arg4: memref<8x128xbf16, #tpu.memory_space<vmem>>) attributes {dimension_semantics = [#tpu.dimension_semantics<parallel>], iteration_bounds = array<i64: 1>, scalar_prefetch = 0 : i64, scratch_operands = 0 : i64, tpu.core_type = #tpu.core_type<tc>, window_params = [{transform_indices = @transform_0, window_bounds = array<i64: 8, 512>}, {pipeline_mode = #tpu.pipeline_mode<synchronous>, transform_indices = @transform_1, window_bounds = array<i64: 512, 128>}, {pipeline_mode = #tpu.pipeline_mode<synchronous>, transform_indices = @transform_2, window_bounds = array<i64: 1, 128>}, {transform_indices = @transform_3, window_bounds = array<i64: 8, 128>}]} {
    %c0 = arith.constant 0 : index
    %c0_0 = arith.constant 0 : index
    %0 = vector.load %arg1[%c0, %c0_0] : memref<8x512xbf16, #tpu.memory_space<vmem>>, vector<8x512xbf16>
    %c0_1 = arith.constant 0 : index
    %c0_2 = arith.constant 0 : index
    %1 = vector.load %arg2[%c0_1, %c0_2] : memref<512x128xbf16, #tpu.memory_space<vmem>>, vector<512x128xbf16>
    %cst = arith.constant dense<0.000000e+00> : vector<8x128xf32>
    %2 = tpu.matmul %0, %1, %cst {dimension_numbers = #tpu.dot_dimension_numbers<[1], [0], [0], [1], [0, 0, 1, 1], [], []>} : vector<8x512xbf16>, vector<512x128xbf16>, vector<8x128xf32> -> vector<8x128xf32>
    %c0_3 = arith.constant 0 : index
    %c0_4 = arith.constant 0 : index
    %3 = vector.load %arg3[%c0_3, %c0_4] : memref<1x128xf32, #tpu.memory_space<vmem>>, vector<1x128xf32>
    %4 = vector.broadcast %3 : vector<1x128xf32> to vector<8x128xf32>
    %5 = arith.addf %2, %4 : vector<8x128xf32>
    %cst_5 = arith.constant 0.000000e+00 : f32
    %6 = vector.broadcast %cst_5 : f32 to vector<8x128xf32>
    %7 = arith.maximumf %5, %6 : vector<8x128xf32>
    %8 = arith.truncf %7 : vector<8x128xf32> to vector<8x128xbf16>
    %c0_6 = arith.constant 0 : index
    %c0_7 = arith.constant 0 : index
    %9 = vector.load %arg4[%c0_6, %c0_7] : memref<8x128xbf16, #tpu.memory_space<vmem>>, vector<8x128xbf16>
    tpu.vector_store %arg4[%c0_6, %c0_7], %8 {strides = array<i32>} : memref<8x128xbf16, #tpu.memory_space<vmem>>, vector<8x128xbf16>,
    return
  }
  func.func @transform_0(%arg0: i32) -> (i32, i32) {
    %c0_i32 = arith.constant 0 : i32
    %c0_i32_0 = arith.constant 0 : i32
    return %arg0, %c0_i32 : i32, i32
  }
  func.func @transform_1(%arg0: i32) -> (i32, i32) {
    %c0_i32 = arith.constant 0 : i32
    %c0_i32_0 = arith.constant 0 : i32
    %c0_i32_1 = arith.constant 0 : i32
    return %c0_i32, %c0_i32_0 : i32, i32
  }
  func.func @transform_2(%arg0: i32) -> (i32, i32) {
    %c0_i32 = arith.constant 0 : i32
    %c0_i32_0 = arith.constant 0 : i32
    %c0_i32_1 = arith.constant 0 : i32
    return %c0_i32, %c0_i32_0 : i32, i32
  }
  func.func @transform_3(%arg0: i32) -> (i32, i32) {
    %c0_i32 = arith.constant 0 : i32
    %c0_i32_0 = arith.constant 0 : i32
    return %arg0, %c0_i32 : i32, i32
  }
}

</mosaic_0001>

<llo_original>
// kernel: mixer_forward.3
$region0: #{mixer_forward.3}
  #allocation0 [shape = 'u32[]', space=smem, size = 0x4, offset = 0x4, fixed_abs, tag = 'smem constant byte address 0x4 - core index']
  #allocation1 [shape = 'u32[144,128]{1,0:T(1,128)}', space=vmem, size = 0x12000, scoped, tag = 'internal scratch']
  %s0 = inlined_call_operand.vmem [shape: bf16[1568,128], index: 0, kind: input, shape index: {}]
  %s1 = inlined_call_operand.vmem [shape: bf16[128,128], index: 1, kind: input, shape index: {}]
  %s2 = inlined_call_operand.vmem [shape: f32[1,128], index: 2, kind: input, shape index: {}]
  %s3 = inlined_call_operand.vmem [shape: bf16[1568,128], index: 3, kind: output, shape index: {}]
  %s4 = sld [smem:[#allocation0]]
  $region45: #{mixer_forward.3} parent=0
    _
  %s6 = ssub.s32 1, %s4
  %s7 = scalar_select 0, %s6, %s4
  loop: start=0, step=1, limit=4
  $region2: #{mixer_forward.3} parent=0 // loop_pre_header
    _
  $region3: #{mixer_forward.3} parent=0 // loop_header
    %s9 = sphi 0, %s13
    %p10 = scmp.ge.s32.totalorder %s9, 4
    %s19 = sphi 0, %s21
    %s22 = sphi 0, %s19
    %s23 = sphi 0, %s22
    %s39 = sphi 0, %s23
    %s43 = sphi 0, %s43
    %s45 = sphi 0, %s43
    %s46 = sphi 0, %s45
    %s60 = sphi 0, %s46
    %s64 = sphi 0, %s64
    %s66 = sphi 0, %s64
    %s67 = sphi 0, %s66
    %s81 = sphi 0, %s67
    %s87 = sphi 0, %s89
    %s90 = sphi 0, %s87
    %s91 = sphi 0, %s90
    %s107 = sphi 0, %s91
  $region4: #{mixer_forward.3} parent=0 // loop_header_branch
    %12 = sbr.rel (%p10) target = $region8
  $region5: #{mixer_forward.3} parent=0 // loop_body
    %s14 = ssub.s32 %s9, 1
    %s15 = ssub.s32 %s9, 2
    %s16 = sadd.s32 %s9, 1
    %s17 = ssub.s32 %s9, %s16
    %p18 = scmp.eq.s32.totalorder %s17, 0
    %s20 = sadd.s32 %s19, 1
    %s21 = scalar_select %p18, %s19, %s20
    %p24 = pneg %p18
    %p25 = scmp.eq.s32.totalorder %s9, 1
    %p26 = por %p24, %p25
    %p27 = scmp.ne.s32.totalorder %s19, %s22
    %p28 = scmp.eq.s32.totalorder %s9, 0
    %p29 = por %p27, %p28
    %p30 = scmp.ne.s32.totalorder %s19, %s22
    %p31 = scmp.eq.s32.totalorder %s14, 1
    %p32 = por %p30, %p31
    %p33 = scmp.ne.s32.totalorder %s22, %s23
    %p34 = scmp.eq.s32.totalorder %s14, 0
    %p35 = por %p33, %p34
    %p36 = scmp.ne.s32.totalorder %s22, %s23
    %p37 = scmp.eq.s32.totalorder %s15, 1
    %p38 = por %p36, %p37
    %p40 = scmp.ne.s32.totalorder %s23, %s39
    %p41 = scmp.eq.s32.totalorder %s15, 0
    %p42 = por %p40, %p41
    %s44 = sadd.s32 %s43, 1
    %p47 = scmp.eq.s32.totalorder %s9, 1
    %p48 = scmp.ne.s32.totalorder %s43, %s45
    %p49 = scmp.eq.s32.totalorder %s9, 0
    %p50 = por %p48, %p49
    %p51 = scmp.ne.s32.totalorder %s43, %s45
    %p52 = scmp.eq.s32.totalorder %s14, 1
    %p53 = por %p51, %p52
    %p54 = scmp.ne.s32.totalorder %s45, %s46
    %p55 = scmp.eq.s32.totalorder %s14, 0
    %p56 = por %p54, %p55
    %p57 = scmp.ne.s32.totalorder %s45, %s46
    %p58 = scmp.eq.s32.totalorder %s15, 1
    %p59 = por %p57, %p58
    %p61 = scmp.ne.s32.totalorder %s46, %s60
    %p62 = scmp.eq.s32.totalorder %s15, 0
    %p63 = por %p61, %p62
    %s65 = sadd.s32 %s64, 1
    %p68 = scmp.eq.s32.totalorder %s9, 1
    %p69 = scmp.ne.s32.totalorder %s64, %s66
    %p70 = scmp.eq.s32.totalorder %s9, 0
    %p71 = por %p69, %p70
    %p72 = scmp.ne.s32.totalorder %s64, %s66
    %p73 = scmp.eq.s32.totalorder %s14, 1
    %p74 = por %p72, %p73
    %p75 = scmp.ne.s32.totalorder %s66, %s67
    %p76 = scmp.eq.s32.totalorder %s14, 0
    %p77 = por %p75, %p76
    %p78 = scmp.ne.s32.totalorder %s66, %s67
    %p79 = scmp.eq.s32.totalorder %s15, 1
    %p80 = por %p78, %p79
    %p82 = scmp.ne.s32.totalorder %s67, %s81
    %p83 = scmp.eq.s32.totalorder %s15, 0
    %p84 = por %p82, %p83
    %s85 = ssub.s32 %s9, %s16
    %p86 = scmp.eq.s32.totalorder %s85, 0
    %s88 = sadd.s32 %s87, 1
    %s89 = scalar_select %p86, %s87, %s88
    %p92 = pneg %p86
    %p93 = scmp.eq.s32.totalorder %s9, 1
    %p94 = por %p92, %p93
    %p95 = scmp.ne.s32.totalorder %s87, %s90
    %p96 = scmp.eq.s32.totalorder %s9, 0
    %p97 = por %p95, %p96
    %p98 = scmp.ne.s32.totalorder %s87, %s90
    %p99 = scmp.eq.s32.totalorder %s14, 1
    %p100 = por %p98, %p99
    %p101 = scmp.ne.s32.totalorder %s90, %s91
    %p102 = scmp.eq.s32.totalorder %s14, 0
    %p103 = por %p101, %p102
    %p104 = scmp.ne.s32.totalorder %s90, %s91
    %p105 = scmp.eq.s32.totalorder %s15, 1
    %p106 = por %p104, %p105
    %p108 = scmp.ne.s32.totalorder %s91, %s107
    %p109 = scmp.eq.s32.totalorder %s15, 0
    %p110 = por %p108, %p109
    %p111 = scmp.le.s32.totalorder 1, %s9
    %p112 = scmp.lt.s32.totalorder %s9, 3
    %p113 = pnand %p111, %p112
    %p114 = pneg %p113
    // Predicated region
    $region9: #{mixer_forward.3} parent=5 // pred_check
      _
    $region10: #{mixer_forward.3} parent=5 // pred_check_branch
      %116 = sbr.rel (%p113) target = $region12
    $region11: #{mixer_forward.3} parent=5 // pred_region
      %s117 = ssub.s32 %s9, 1
      // Predicated region
      $region13: #{mixer_forward.3} parent=11 // pred_check
        %p118 = pneg %p56
      $region14: #{mixer_forward.3} parent=11 // pred_check_branch
        %120 = sbr.rel (%p118) target = $region16
      $region15: #{mixer_forward.3} parent=11 // pred_region
        _
      $region16: #{mixer_forward.3} parent=11 // pred_fallthru
        _
      // Predicated region
      $region17: #{mixer_forward.3} parent=11 // pred_check
        %p121 = pneg %p77
      $region18: #{mixer_forward.3} parent=11 // pred_check_branch
        %123 = sbr.rel (%p121) target = $region20
      $region19: #{mixer_forward.3} parent=11 // pred_region
        _
      $region20: #{mixer_forward.3} parent=11 // pred_fallthru
        _
    $region12: #{mixer_forward.3} parent=5 // pred_fallthru
      _
    %p124 = scmp.lt.s32.totalorder %s9, 2
    // Predicated region
    $region21: #{mixer_forward.3} parent=5 // pred_check
      %p125 = pneg %p124
    $region22: #{mixer_forward.3} parent=5 // pred_check_branch
      %127 = sbr.rel (%p125) target = $region24
    $region23: #{mixer_forward.3} parent=5 // pred_region
      // Predicated region
      $region25: #{mixer_forward.3} parent=23 // pred_check
        %p128 = pneg %p29
      $region26: #{mixer_forward.3} parent=23 // pred_check_branch
        %130 = sbr.rel (%p128) target = $region28
      $region27: #{mixer_forward.3} parent=23 // pred_region
        %s131 = smul.u32 98, %s9
        %p132 = scmp.lt.s32.totalorder %s131, 195
        %s133 = scalar_select %p132, %s131, 195
        %s134 = smul.addr %s133, 4
        %s135 = scalar_lea.vmem %s0, %s134
        %s136 = smul.u32 98, %s9
      $region28: #{mixer_forward.3} parent=23 // pred_fallthru
        _
    $region24: #{mixer_forward.3} parent=5 // pred_fallthru
      _
    %p137 = scmp.le.s32.totalorder 1, %s9
    %p138 = scmp.lt.s32.totalorder %s9, 3
    %p139 = pnand %p137, %p138
    %p140 = pneg %p139
    // Predicated region
    $region29: #{mixer_forward.3} parent=5 // pred_check
      _
    $region30: #{mixer_forward.3} parent=5 // pred_check_branch
      %142 = sbr.rel (%p139) target = $region32
    $region31: #{mixer_forward.3} parent=5 // pred_region
      %s143 = ssub.s32 %s9, 1
      %s144 = smul.u32 98, %s14
      %p145 = scmp.lt.s32.totalorder %s144, 195
      %s146 = scalar_select %p145, %s144, 195
      %s147 = smul.addr %s146, 4
      %s148 = scalar_lea.vmem %s0, %s147
      %p149 = pneg %p35
      %p150 = pneg %p32
      %p151 = pneg %p56
      %p152 = pneg %p53
      %p153 = pneg %p77
      %p154 = pneg %p74
      %p155 = pneg %p103
      %p156 = pneg %p100
      %s157 = smul.u32 98, %s14
      %p158 = scmp.lt.s32.totalorder %s157, 195
      %s159 = scalar_select %p158, %s157, 195
      %s160 = smul.addr %s159, 4
      %s161 = scalar_lea.vmem %s3, %s160
      %s162 = smul.u32 98, %s14
      %p163 = scmp.lt.s32.totalorder %s162, 195
      %s164 = scalar_select %p163, %s162, 195
      %s165 = smul.addr %s164, 4
      %s166 = scalar_lea.vmem %s0, %s165
      %s167 = smul.u32 98, %s14
      %s168 = smul.u32 98, %s14
      %p169 = scmp.lt.s32.totalorder %s168, 195
      %s170 = scalar_select %p169, %s168, 195
      %s171 = smul.addr %s170, 4
      %s172 = scalar_lea.vmem %s3, %s171
      %s173 = smul.u32 98, %s14
      %v175 = vld [vmem:[%s166] sm:$0xf]
      %v176 = vld [vmem:[%s166 + $0x4] sm:$0xf]
      %v177 = vld [vmem:[%s166 + $0x8] sm:$0xf]
      %v178 = vld [vmem:[%s166 + $0xc] sm:$0xf]
      %v179 = vld [vmem:[%s166 + $0x10] sm:$0xf]
      %v180 = vld [vmem:[%s166 + $0x14] sm:$0xf]
      %v181 = vld [vmem:[%s166 + $0x18] sm:$0xf]
      %v182 = vld [vmem:[%s166 + $0x1c] sm:$0xf]
      %v183 = vld [vmem:[%s166 + $0x20] sm:$0xf]
      %v184 = vld [vmem:[%s166 + $0x24] sm:$0xf]
      %v185 = vld [vmem:[%s166 + $0x28] sm:$0xf]
      %v186 = vld [vmem:[%s166 + $0x2c] sm:$0xf]
      %v187 = vld [vmem:[%s166 + $0x30] sm:$0xf]
      %v188 = vld [vmem:[%s166 + $0x34] sm:$0xf]
      %v189 = vld [vmem:[%s166 + $0x38] sm:$0xf]
      %v190 = vld [vmem:[%s166 + $0x3c] sm:$0xf]
      %v191 = vld [vmem:[%s166 + $0x40] sm:$0xf]
      %v192 = vld [vmem:[%s166 + $0x44] sm:$0xf]
      %v193 = vld [vmem:[%s166 + $0x48] sm:$0xf]
      %v194 = vld [vmem:[%s166 + $0x4c] sm:$0xf]
      %v195 = vld [vmem:[%s166 + $0x50] sm:$0xf]
      %v196 = vld [vmem:[%s166 + $0x54] sm:$0xf]
      %v197 = vld [vmem:[%s166 + $0x58] sm:$0xf]
      %v198 = vld [vmem:[%s166 + $0x5c] sm:$0xf]
      %v199 = vld [vmem:[%s166 + $0x60] sm:$0xf]
      %v200 = vld [vmem:[%s166 + $0x64] sm:$0xf]
      %v201 = vld [vmem:[%s166 + $0x68] sm:$0xf]
      %v202 = vld [vmem:[%s166 + $0x6c] sm:$0xf]
      %v203 = vld [vmem:[%s166 + $0x70] sm:$0xf]
      %v204 = vld [vmem:[%s166 + $0x74] sm:$0xf]
      %v205 = vld [vmem:[%s166 + $0x78] sm:$0xf]
      %v206 = vld [vmem:[%s166 + $0x7c] sm:$0xf]
      %v207 = vld [vmem:[%s166 + $0x80] sm:$0xf]
      %v208 = vld [vmem:[%s166 + $0x84] sm:$0xf]
      %v209 = vld [vmem:[%s166 + $0x88] sm:$0xf]
      %v210 = vld [vmem:[%s166 + $0x8c] sm:$0xf]
      %v211 = vld [vmem:[%s166 + $0x90] sm:$0xf]
      %v212 = vld [vmem:[%s166 + $0x94] sm:$0xf]
      %v213 = vld [vmem:[%s166 + $0x98] sm:$0xf]
      %v214 = vld [vmem:[%s166 + $0x9c] sm:$0xf]
      %v215 = vld [vmem:[%s166 + $0xa0] sm:$0xf]
      %v216 = vld [vmem:[%s166 + $0xa4] sm:$0xf]
      %v217 = vld [vmem:[%s166 + $0xa8] sm:$0xf]
      %v218 = vld [vmem:[%s166 + $0xac] sm:$0xf]
      %v219 = vld [vmem:[%s166 + $0xb0] sm:$0xf]
      %v220 = vld [vmem:[%s166 + $0xb4] sm:$0xf]
      %v221 = vld [vmem:[%s166 + $0xb8] sm:$0xf]
      %v222 = vld [vmem:[%s166 + $0xbc] sm:$0xf]
      %v223 = vld [vmem:[%s166 + $0xc0] sm:$0xf]
      %v224 = vld [vmem:[%s166 + $0xc4] sm:$0xf]
      %v225 = vld [vmem:[%s166 + $0xc8] sm:$0xf]
      %v226 = vld [vmem:[%s166 + $0xcc] sm:$0xf]
      %v227 = vld [vmem:[%s166 + $0xd0] sm:$0xf]
      %v228 = vld [vmem:[%s166 + $0xd4] sm:$0xf]
      %v229 = vld [vmem:[%s166 + $0xd8] sm:$0xf]
      %v230 = vld [vmem:[%s166 + $0xdc] sm:$0xf]
      %v231 = vld [vmem:[%s166 + $0xe0] sm:$0xf]
      %v232 = vld [vmem:[%s166 + $0xe4] sm:$0xf]
      %v233 = vld [vmem:[%s166 + $0xe8] sm:$0xf]
      %v234 = vld [vmem:[%s166 + $0xec] sm:$0xf]
      %v235 = vld [vmem:[%s166 + $0xf0] sm:$0xf]
      %v236 = vld [vmem:[%s166 + $0xf4] sm:$0xf]
      %v237 = vld [vmem:[%s166 + $0xf8] sm:$0xf]
      %v238 = vld [vmem:[%s166 + $0xfc] sm:$0xf]
      %v239 = vld [vmem:[%s166 + $0x100] sm:$0xf]
      %v240 = vld [vmem:[%s166 + $0x104] sm:$0xf]
      %v241 = vld [vmem:[%s166 + $0x108] sm:$0xf]
      %v242 = vld [vmem:[%s166 + $0x10c] sm:$0xf]
      %v243 = vld [vmem:[%s166 + $0x110] sm:$0xf]
      %v244 = vld [vmem:[%s166 + $0x114] sm:$0xf]
      %v245 = vld [vmem:[%s166 + $0x118] sm:$0xf]
      %v246 = vld [vmem:[%s166 + $0x11c] sm:$0xf]
      %v247 = vld [vmem:[%s166 + $0x120] sm:$0xf]
      %v248 = vld [vmem:[%s166 + $0x124] sm:$0xf]
      %v249 = vld [vmem:[%s166 + $0x128] sm:$0xf]
      %v250 = vld [vmem:[%s166 + $0x12c] sm:$0xf]
      %v251 = vld [vmem:[%s166 + $0x130] sm:$0xf]
      %v252 = vld [vmem:[%s166 + $0x134] sm:$0xf]
      %v253 = vld [vmem:[%s166 + $0x138] sm:$0xf]
      %v254 = vld [vmem:[%s166 + $0x13c] sm:$0xf]
      %v255 = vld [vmem:[%s166 + $0x140] sm:$0xf]
      %v256 = vld [vmem:[%s166 + $0x144] sm:$0xf]
      %v257 = vld [vmem:[%s166 + $0x148] sm:$0xf]
      %v258 = vld [vmem:[%s166 + $0x14c] sm:$0xf]
      %v259 = vld [vmem:[%s166 + $0x150] sm:$0xf]
      %v260 = vld [vmem:[%s166 + $0x154] sm:$0xf]
      %v261 = vld [vmem:[%s166 + $0x158] sm:$0xf]
      %v262 = vld [vmem:[%s166 + $0x15c] sm:$0xf]
      %v263 = vld [vmem:[%s166 + $0x160] sm:$0xf]
      %v264 = vld [vmem:[%s166 + $0x164] sm:$0xf]
      %v265 = vld [vmem:[%s166 + $0x168] sm:$0xf]
      %v266 = vld [vmem:[%s166 + $0x16c] sm:$0xf]
      %v267 = vld [vmem:[%s166 + $0x170] sm:$0xf]
      %v268 = vld [vmem:[%s166 + $0x174] sm:$0xf]
      %v269 = vld [vmem:[%s166 + $0x178] sm:$0xf]
      %v270 = vld [vmem:[%s166 + $0x17c] sm:$0xf]
      %v271 = vld [vmem:[%s166 + $0x180] sm:$0xf]
      %v272 = vld [vmem:[%s166 + $0x184] sm:$0xf]
      %v273 = vld [vmem:[%s1] sm:$0xf]
      %v274 = vld [vmem:[%s1 + $0x4] sm:$0xf]
      %v275 = vld [vmem:[%s1 + $0x8] sm:$0xf]
      %v276 = vld [vmem:[%s1 + $0xc] sm:$0xf]
      %v277 = vld [vmem:[%s1 + $0x10] sm:$0xf]
      %v278 = vld [vmem:[%s1 + $0x14] sm:$0xf]
      %v279 = vld [vmem:[%s1 + $0x18] sm:$0xf]
      %v280 = vld [vmem:[%s1 + $0x1c] sm:$0xf]
      %v281 = vld [vmem:[%s1 + $0x20] sm:$0xf]
      %v282 = vld [vmem:[%s1 + $0x24] sm:$0xf]
      %v283 = vld [vmem:[%s1 + $0x28] sm:$0xf]
      %v284 = vld [vmem:[%s1 + $0x2c] sm:$0xf]
      %v285 = vld [vmem:[%s1 + $0x30] sm:$0xf]
      %v286 = vld [vmem:[%s1 + $0x34] sm:$0xf]
      %v287 = vld [vmem:[%s1 + $0x38] sm:$0xf]
      %v288 = vld [vmem:[%s1 + $0x3c] sm:$0xf]
      %v289 = vld [vmem:[%s2] sm:$0x1]
      %v291 = vlaneseq
      %v292 = vshrl.u32 %v291, 7
      %v293 = vsub.s32 0, %v292
      %v294 = vrot.slane %v289, %v293
      %v394 = vunpack.c.l.b16 %v175
      %v395 = vunpack.c.l.b16 %v176
      %v396 = vunpack.c.l.b16 %v177
      %v397 = vunpack.c.l.b16 %v178
      %v398 = vunpack.c.l.b16 %v179
      %v399 = vunpack.c.l.b16 %v180
      %v400 = vunpack.c.l.b16 %v181
      %v401 = vunpack.c.l.b16 %v182
      %v402 = vunpack.c.l.b16 %v183
      %v403 = vunpack.c.l.b16 %v184
      %v404 = vunpack.c.l.b16 %v185
      %v405 = vunpack.c.l.b16 %v186
      %v406 = vunpack.c.l.b16 %v187
      %v407 = vunpack.c.l.b16 %v188
      %v408 = vunpack.c.l.b16 %v189
      %v409 = vunpack.c.l.b16 %v190
      %v410 = vunpack.c.l.b16 %v191
      %v411 = vunpack.c.l.b16 %v192
      %v412 = vunpack.c.l.b16 %v193
      %v413 = vunpack.c.l.b16 %v194
      %v414 = vunpack.c.l.b16 %v195
      %v415 = vunpack.c.l.b16 %v196
      %v416 = vunpack.c.l.b16 %v197
      %v417 = vunpack.c.l.b16 %v198
      %v418 = vunpack.c.l.b16 %v199
      %v419 = vunpack.c.l.b16 %v200
      %v420 = vunpack.c.l.b16 %v201
      %v421 = vunpack.c.l.b16 %v202
      %v422 = vunpack.c.l.b16 %v203
      %v423 = vunpack.c.l.b16 %v204
      %v424 = vunpack.c.l.b16 %v205
      %v425 = vunpack.c.l.b16 %v206
      %v426 = vunpack.c.l.b16 %v207
      %v427 = vunpack.c.l.b16 %v208
      %v428 = vunpack.c.l.b16 %v209
      %v429 = vunpack.c.l.b16 %v210
      %v430 = vunpack.c.l.b16 %v211
      %v431 = vunpack.c.l.b16 %v212
      %v432 = vunpack.c.l.b16 %v213
      %v433 = vunpack.c.l.b16 %v214
      %v434 = vunpack.c.l.b16 %v215
      %v435 = vunpack.c.l.b16 %v216
      %v436 = vunpack.c.l.b16 %v217
      %v437 = vunpack.c.l.b16 %v218
      %v438 = vunpack.c.l.b16 %v219
      %v439 = vunpack.c.l.b16 %v220
      %v440 = vunpack.c.l.b16 %v221
      %v441 = vunpack.c.l.b16 %v222
      %v442 = vunpack.c.l.b16 %v223
      %v443 = vunpack.c.l.b16 %v224
      %v444 = vunpack.c.l.b16 %v225
      %v445 = vunpack.c.l.b16 %v226
      %v446 = vunpack.c.l.b16 %v227
      %v447 = vunpack.c.l.b16 %v228
      %v448 = vunpack.c.l.b16 %v229
      %v449 = vunpack.c.l.b16 %v230
      %v450 = vunpack.c.l.b16 %v231
      %v451 = vunpack.c.l.b16 %v232
      %v452 = vunpack.c.l.b16 %v233
      %v453 = vunpack.c.l.b16 %v234
      %v454 = vunpack.c.l.b16 %v235
      %v455 = vunpack.c.l.b16 %v236
      %v456 = vunpack.c.l.b16 %v237
      %v457 = vunpack.c.l.b16 %v238
      %v458 = vunpack.c.l.b16 %v239
      %v459 = vunpack.c.l.b16 %v240
      %v460 = vunpack.c.l.b16 %v241
      %v461 = vunpack.c.l.b16 %v242
      %v462 = vunpack.c.l.b16 %v243
      %v463 = vunpack.c.l.b16 %v244
      %v464 = vunpack.c.l.b16 %v245
      %v465 = vunpack.c.l.b16 %v246
      %v466 = vunpack.c.l.b16 %v247
      %v467 = vunpack.c.l.b16 %v248
      %v468 = vunpack.c.l.b16 %v249
      %v469 = vunpack.c.l.b16 %v250
      %v470 = vunpack.c.l.b16 %v251
      %v471 = vunpack.c.l.b16 %v252
      %v472 = vunpack.c.l.b16 %v253
      %v473 = vunpack.c.l.b16 %v254
      %v474 = vunpack.c.l.b16 %v255
      %v475 = vunpack.c.l.b16 %v256
      %v476 = vunpack.c.l.b16 %v257
      %v477 = vunpack.c.l.b16 %v258
      %v478 = vunpack.c.l.b16 %v259
      %v479 = vunpack.c.l.b16 %v260
      %v480 = vunpack.c.l.b16 %v261
      %v481 = vunpack.c.l.b16 %v262
      %v482 = vunpack.c.l.b16 %v263
      %v483 = vunpack.c.l.b16 %v264
      %v484 = vunpack.c.l.b16 %v265
      %v485 = vunpack.c.l.b16 %v266
      %v486 = vunpack.c.l.b16 %v267
      %v487 = vunpack.c.l.b16 %v268
      %v488 = vunpack.c.l.b16 %v269
      %v489 = vunpack.c.l.b16 %v270
      %v490 = vunpack.c.l.b16 %v271
      %v491 = vunpack.c.l.b16 %v272
      %v492 = vpack.c.b16 %v395, %v394
      %v493 = vpack.c.b16 %v397, %v396
      %v494 = vpack.c.b16 %v399, %v398
      %v495 = vpack.c.b16 %v401, %v400
      %v496 = vpack.c.b16 %v403, %v402
      %v497 = vpack.c.b16 %v405, %v404
      %v498 = vpack.c.b16 %v407, %v406
      %v499 = vpack.c.b16 %v409, %v408
      %v500 = vpack.c.b16 %v411, %v410
      %v501 = vpack.c.b16 %v413, %v412
      %v502 = vpack.c.b16 %v415, %v414
      %v503 = vpack.c.b16 %v417, %v416
      %v504 = vpack.c.b16 %v419, %v418
      %v505 = vpack.c.b16 %v421, %v420
      %v506 = vpack.c.b16 %v423, %v422
      %v507 = vpack.c.b16 %v425, %v424
      %v508 = vpack.c.b16 %v427, %v426
      %v509 = vpack.c.b16 %v429, %v428
      %v510 = vpack.c.b16 %v431, %v430
      %v511 = vpack.c.b16 %v433, %v432
      %v512 = vpack.c.b16 %v435, %v434
      %v513 = vpack.c.b16 %v437, %v436
      %v514 = vpack.c.b16 %v439, %v438
      %v515 = vpack.c.b16 %v441, %v440
      %v516 = vpack.c.b16 %v443, %v442
      %v517 = vpack.c.b16 %v445, %v444
      %v518 = vpack.c.b16 %v447, %v446
      %v519 = vpack.c.b16 %v449, %v448
      %v520 = vpack.c.b16 %v451, %v450
      %v521 = vpack.c.b16 %v453, %v452
      %v522 = vpack.c.b16 %v455, %v454
      %v523 = vpack.c.b16 %v457, %v456
      %v524 = vpack.c.b16 %v459, %v458
      %v525 = vpack.c.b16 %v461, %v460
      %v526 = vpack.c.b16 %v463, %v462
      %v527 = vpack.c.b16 %v465, %v464
      %v528 = vpack.c.b16 %v467, %v466
      %v529 = vpack.c.b16 %v469, %v468
      %v530 = vpack.c.b16 %v471, %v470
      %v531 = vpack.c.b16 %v473, %v472
      %v532 = vpack.c.b16 %v475, %v474
      %v533 = vpack.c.b16 %v477, %v476
      %v534 = vpack.c.b16 %v479, %v478
      %v535 = vpack.c.b16 %v481, %v480
      %v536 = vpack.c.b16 %v483, %v482
      %v537 = vpack.c.b16 %v485, %v484
      %v538 = vpack.c.b16 %v487, %v486
      %v539 = vpack.c.b16 %v489, %v488
      %v540 = vpack.c.b16 %v491, %v490
      %v606 = vunpack.c.l.b16 %v273
      %v607 = vunpack.c.l.b16 %v274
      %v608 = vunpack.c.l.b16 %v275
      %v609 = vunpack.c.l.b16 %v276
      %v610 = vunpack.c.l.b16 %v277
      %v611 = vunpack.c.l.b16 %v278
      %v612 = vunpack.c.l.b16 %v279
      %v613 = vunpack.c.l.b16 %v280
      %v614 = vunpack.c.l.b16 %v281
      %v615 = vunpack.c.l.b16 %v282
      %v616 = vunpack.c.l.b16 %v283
      %v617 = vunpack.c.l.b16 %v284
      %v618 = vunpack.c.l.b16 %v285
      %v619 = vunpack.c.l.b16 %v286
      %v620 = vunpack.c.l.b16 %v287
      %v621 = vunpack.c.l.b16 %v288
      %v622 = vpack.c.b16 %v607, %v606
      %v623 = vpack.c.b16 %v609, %v608
      %v624 = vpack.c.b16 %v611, %v610
      %v625 = vpack.c.b16 %v613, %v612
      %v626 = vpack.c.b16 %v615, %v614
      %v627 = vpack.c.b16 %v617, %v616
      %v628 = vpack.c.b16 %v619, %v618
      %v629 = vpack.c.b16 %v621, %v620
      %638 = vmatprep.subr.bf16.mxu0 0
      %639 = vmatpush1.bf16.msra.mxu0 %v622
      %640 = vmatprep.subr.bf16.mxu0 0
      %641 = vmatpush1.bf16.msra.mxu0 %v623
      %642 = vmatprep.subr.bf16.mxu0 0
      %643 = vmatpush1.bf16.msra.mxu0 %v624
      %644 = vmatprep.subr.bf16.mxu0 0
      %645 = vmatpush1.bf16.msra.mxu0 %v625
      %646 = vmatprep.subr.bf16.mxu0 0
      %647 = vmatpush1.bf16.msra.mxu0 %v626
      %648 = vmatprep.subr.bf16.mxu0 0
      %649 = vmatpush1.bf16.msra.mxu0 %v627
      %650 = vmatprep.subr.bf16.mxu0 0
      %651 = vmatpush1.bf16.msra.mxu0 %v628
      %652 = vmatprep.subr.bf16.mxu0 0
      %653 = vmatpush1.bf16.msra.mxu0 %v629
      %654 = vmatprep.subr.bf16.mxu0 0
      %655 = vmatpush1.bf16.msra.mxu0 0
      %656 = vmatprep.subr.bf16.mxu0 0
      %657 = vmatpush1.bf16.msra.mxu0 0
      %658 = vmatprep.subr.bf16.mxu0 0
      %659 = vmatpush1.bf16.msra.mxu0 0
      %660 = vmatprep.subr.bf16.mxu0 0
      %661 = vmatpush1.bf16.msra.mxu0 0
      %662 = vmatprep.subr.bf16.mxu0 0
      %663 = vmatpush1.bf16.msra.mxu0 0
      %664 = vmatprep.subr.bf16.mxu0 0
      %665 = vmatpush1.bf16.msra.mxu0 0
      %666 = vmatprep.subr.bf16.mxu0 0
      %667 = vmatpush1.bf16.msra.mxu0 0
      %668 = vmatprep.subr.bf16.mxu0 0
      %669 = vmatpush1.bf16.msra.mxu0 0
      %670 = vmatprep.mubr.bf16.mxu0 0
      %671 = vmatmul.mubr.bf16.gmra.mrb[0].mxu0 %v492
      %v672 = vpop.f32.mrb[0].mxu0
      %v673 = vadd.f32 %v294, %v672
      %v674 = vpop.f32.mrb[0].mxu0
      %v675 = vpop.f32.mrb[0].mxu0
      %v676 = vadd.f32 %v294, %v675
      %v677 = vpop.f32.mrb[0].mxu0
      %678 = vmatprep.mubr.bf16.mxu0 0
      %679 = vmatmul.mubr.bf16.gmra.mrb[0].mxu0 %v493
      %v680 = vpop.f32.mrb[0].mxu0
      %v681 = vadd.f32 %v294, %v680
      %v682 = vpop.f32.mrb[0].mxu0
      %v683 = vpop.f32.mrb[0].mxu0
      %v684 = vadd.f32 %v294, %v683
      %v685 = vpop.f32.mrb[0].mxu0
      %686 = vmatprep.mubr.bf16.mxu0 0
      %687 = vmatmul.mubr.bf16.gmra.mrb[0].mxu0 %v494
      %v688 = vpop.f32.mrb[0].mxu0
      %v689 = vadd.f32 %v294, %v688
      %v690 = vpop.f32.mrb[0].mxu0
      %v691 = vpop.f32.mrb[0].mxu0
      %v692 = vadd.f32 %v294, %v691
      %v693 = vpop.f32.mrb[0].mxu0
      %694 = vmatprep.mubr.bf16.mxu0 0
      %695 = vmatmul.mubr.bf16.gmra.mrb[0].mxu0 %v495
      %v696 = vpop.f32.mrb[0].mxu0
      %v697 = vadd.f32 %v294, %v696
      %v698 = vpop.f32.mrb[0].mxu0
      %v699 = vpop.f32.mrb[0].mxu0
      %v700 = vadd.f32 %v294, %v699
      %v701 = vpop.f32.mrb[0].mxu0
      %702 = vmatprep.mubr.bf16.mxu0 0
      %703 = vmatmul.mubr.bf16.gmra.mrb[0].mxu0 %v496
      %v704 = vpop.f32.mrb[0].mxu0
      %v705 = vadd.f32 %v294, %v704
      %v706 = vpop.f32.mrb[0].mxu0
      %v707 = vpop.f32.mrb[0].mxu0
      %v708 = vadd.f32 %v294, %v707
      %v709 = vpop.f32.mrb[0].mxu0
      %710 = vmatprep.mubr.bf16.mxu0 0
      %711 = vmatmul.mubr.bf16.gmra.mrb[0].mxu0 %v497
      %v712 = vpop.f32.mrb[0].mxu0
      %v713 = vadd.f32 %v294, %v712
      %v714 = vpop.f32.mrb[0].mxu0
      %v715 = vpop.f32.mrb[0].mxu0
      %v716 = vadd.f32 %v294, %v715
      %v717 = vpop.f32.mrb[0].mxu0
      %718 = vmatprep.mubr.bf16.mxu0 0
      %719 = vmatmul.mubr.bf16.gmra.mrb[0].mxu0 %v498
      %v720 = vpop.f32.mrb[0].mxu0
      %v721 = vadd.f32 %v294, %v720
      %v722 = vpop.f32.mrb[0].mxu0
      %v723 = vpop.f32.mrb[0].mxu0
      %v724 = vadd.f32 %v294, %v723
      %v725 = vpop.f32.mrb[0].mxu0
      %726 = vmatprep.mubr.bf16.mxu0 0
      %727 = vmatmul.mubr.bf16.gmra.mrb[0].mxu0 %v499
      %v728 = vpop.f32.mrb[0].mxu0
      %v729 = vadd.f32 %v294, %v728
      %v730 = vpop.f32.mrb[0].mxu0
      %v731 = vpop.f32.mrb[0].mxu0
      %v732 = vadd.f32 %v294, %v731
      %v733 = vpop.f32.mrb[0].mxu0
      %734 = vmatprep.mubr.bf16.mxu0 0
      %735 = vmatmul.mubr.bf16.gmra.mrb[0].mxu0 %v500
      %v736 = vpop.f32.mrb[0].mxu0
      %v737 = vadd.f32 %v294, %v736
      %v738 = vpop.f32.mrb[0].mxu0
      %v739 = vpop.f32.mrb[0].mxu0
      %v740 = vadd.f32 %v294, %v739
      %v741 = vpop.f32.mrb[0].mxu0
      %742 = vmatprep.mubr.bf16.mxu0 0
      %743 = vmatmul.mubr.bf16.gmra.mrb[0].mxu0 %v501
      %v744 = vpop.f32.mrb[0].mxu0
      %v745 = vadd.f32 %v294, %v744
      %v746 = vpop.f32.mrb[0].mxu0
      %v747 = vpop.f32.mrb[0].mxu0
      %v748 = vadd.f32 %v294, %v747
      %v749 = vpop.f32.mrb[0].mxu0
      %750 = vmatprep.mubr.bf16.mxu0 0
      %751 = vmatmul.mubr.bf16.gmra.mrb[0].mxu0 %v502
      %v752 = vpop.f32.mrb[0].mxu0
      %v753 = vadd.f32 %v294, %v752
      %v754 = vpop.f32.mrb[0].mxu0
      %v755 = vpop.f32.mrb[0].mxu0
      %v756 = vadd.f32 %v294, %v755
      %v757 = vpop.f32.mrb[0].mxu0
      %758 = vmatprep.mubr.bf16.mxu0 0
      %759 = vmatmul.mubr.bf16.gmra.mrb[0].mxu0 %v503
      %v760 = vpop.f32.mrb[0].mxu0
      %v761 = vadd.f32 %v294, %v760
      %v762 = vpop.f32.mrb[0].mxu0
      %v763 = vpop.f32.mrb[0].mxu0
      %v764 = vadd.f32 %v294, %v763
      %v765 = vpop.f32.mrb[0].mxu0
      %766 = vmatprep.mubr.bf16.mxu0 0
      %767 = vmatmul.mubr.bf16.gmra.mrb[0].mxu0 %v504
      %v768 = vpop.f32.mrb[0].mxu0
      %v769 = vadd.f32 %v294, %v768
      %v770 = vpop.f32.mrb[0].mxu0
      %v771 = vpop.f32.mrb[0].mxu0
      %v772 = vadd.f32 %v294, %v771
      %v773 = vpop.f32.mrb[0].mxu0
      %774 = vmatprep.mubr.bf16.mxu0 0
      %775 = vmatmul.mubr.bf16.gmra.mrb[0].mxu0 %v505
      %v776 = vpop.f32.mrb[0].mxu0
      %v777 = vadd.f32 %v294, %v776
      %v778 = vpop.f32.mrb[0].mxu0
      %v779 = vpop.f32.mrb[0].mxu0
      %v780 = vadd.f32 %v294, %v779
      %v781 = vpop.f32.mrb[0].mxu0
      %782 = vmatprep.mubr.bf16.mxu0 0
      %783 = vmatmul.mubr.bf16.gmra.mrb[0].mxu0 %v506
      %v784 = vpop.f32.mrb[0].mxu0
      %v785 = vadd.f32 %v294, %v784
      %v786 = vpop.f32.mrb[0].mxu0
      %v787 = vpop.f32.mrb[0].mxu0
      %v788 = vadd.f32 %v294, %v787
      %v789 = vpop.f32.mrb[0].mxu0
      %790 = vmatprep.mubr.bf16.mxu0 0
      %791 = vmatmul.mubr.bf16.gmra.mrb[0].mxu0 %v507
      %v792 = vpop.f32.mrb[0].mxu0
      %v793 = vadd.f32 %v294, %v792
      %v794 = vpop.f32.mrb[0].mxu0
      %v795 = vpop.f32.mrb[0].mxu0
      %v796 = vadd.f32 %v294, %v795
      %v797 = vpop.f32.mrb[0].mxu0
      %798 = vmatprep.mubr.bf16.mxu0 0
      %799 = vmatmul.mubr.bf16.gmra.mrb[0].mxu0 %v508
      %v800 = vpop.f32.mrb[0].mxu0
      %v801 = vadd.f32 %v294, %v800
      %v802 = vpop.f32.mrb[0].mxu0
      %v803 = vpop.f32.mrb[0].mxu0
      %v804 = vadd.f32 %v294, %v803
      %v805 = vpop.f32.mrb[0].mxu0
      %806 = vmatprep.mubr.bf16.mxu0 0
      %807 = vmatmul.mubr.bf16.gmra.mrb[0].mxu0 %v509
      %v808 = vpop.f32.mrb[0].mxu0
      %v809 = vadd.f32 %v294, %v808
      %v810 = vpop.f32.mrb[0].mxu0
      %v811 = vpop.f32.mrb[0].mxu0
      %v812 = vadd.f32 %v294, %v811
      %v813 = vpop.f32.mrb[0].mxu0
      %814 = vmatprep.mubr.bf16.mxu0 0
      %815 = vmatmul.mubr.bf16.gmra.mrb[0].mxu0 %v510
      %v816 = vpop.f32.mrb[0].mxu0
      %v817 = vadd.f32 %v294, %v816
      %v818 = vpop.f32.mrb[0].mxu0
      %v819 = vpop.f32.mrb[0].mxu0
      %v820 = vadd.f32 %v294, %v819
      %v821 = vpop.f32.mrb[0].mxu0
      %822 = vmatprep.mubr.bf16.mxu0 0
      %823 = vmatmul.mubr.bf16.gmra.mrb[0].mxu0 %v511
      %v824 = vpop.f32.mrb[0].mxu0
      %v825 = vadd.f32 %v294, %v824
      %v826 = vpop.f32.mrb[0].mxu0
      %v827 = vpop.f32.mrb[0].mxu0
      %v828 = vadd.f32 %v294, %v827
      %v829 = vpop.f32.mrb[0].mxu0
      %830 = vmatprep.mubr.bf16.mxu0 0
      %831 = vmatmul.mubr.bf16.gmra.mrb[0].mxu0 %v512
      %v832 = vpop.f32.mrb[0].mxu0
      %v833 = vadd.f32 %v294, %v832
      %v834 = vpop.f32.mrb[0].mxu0
      %v835 = vpop.f32.mrb[0].mxu0
      %v836 = vadd.f32 %v294, %v835
      %v837 = vpop.f32.mrb[0].mxu0
      %838 = vmatprep.mubr.bf16.mxu0 0
      %839 = vmatmul.mubr.bf16.gmra.mrb[0].mxu0 %v513
      %v840 = vpop.f32.mrb[0].mxu0
      %v841 = vadd.f32 %v294, %v840
      %v842 = vpop.f32.mrb[0].mxu0
      %v843 = vpop.f32.mrb[0].mxu0
      %v844 = vadd.f32 %v294, %v843
      %v845 = vpop.f32.mrb[0].mxu0
      %846 = vmatprep.mubr.bf16.mxu0 0
      %847 = vmatmul.mubr.bf16.gmra.mrb[0].mxu0 %v514
      %v848 = vpop.f32.mrb[0].mxu0
      %v849 = vadd.f32 %v294, %v848
      %v850 = vpop.f32.mrb[0].mxu0
      %v851 = vpop.f32.mrb[0].mxu0
      %v852 = vadd.f32 %v294, %v851
      %v853 = vpop.f32.mrb[0].mxu0
      %854 = vmatprep.mubr.bf16.mxu0 0
      %855 = vmatmul.mubr.bf16.gmra.mrb[0].mxu0 %v515
      %v856 = vpop.f32.mrb[0].mxu0
      %v857 = vadd.f32 %v294, %v856
      %v858 = vpop.f32.mrb[0].mxu0
      %v859 = vpop.f32.mrb[0].mxu0
      %v860 = vadd.f32 %v294, %v859
      %v861 = vpop.f32.mrb[0].mxu0
      %862 = vmatprep.mubr.bf16.mxu0 0
      %863 = vmatmul.mubr.bf16.gmra.mrb[0].mxu0 %v516
      %v864 = vpop.f32.mrb[0].mxu0
      %v865 = vadd.f32 %v294, %v864
      %v866 = vpop.f32.mrb[0].mxu0
      %v867 = vpop.f32.mrb[0].mxu0
      %v868 = vadd.f32 %v294, %v867
      %v869 = vpop.f32.mrb[0].mxu0
      %870 = vmatprep.mubr.bf16.mxu0 0
      %871 = vmatmul.mubr.bf16.gmra.mrb[0].mxu0 %v517
      %v872 = vpop.f32.mrb[0].mxu0
      %v873 = vadd.f32 %v294, %v872
      %v874 = vpop.f32.mrb[0].mxu0
      %v875 = vpop.f32.mrb[0].mxu0
      %v876 = vadd.f32 %v294, %v875
      %v877 = vpop.f32.mrb[0].mxu0
      %878 = vmatprep.mubr.bf16.mxu0 0
      %879 = vmatmul.mubr.bf16.gmra.mrb[0].mxu0 %v518
      %v880 = vpop.f32.mrb[0].mxu0
      %v881 = vadd.f32 %v294, %v880
      %v882 = vpop.f32.mrb[0].mxu0
      %v883 = vpop.f32.mrb[0].mxu0
      %v884 = vadd.f32 %v294, %v883
      %v885 = vpop.f32.mrb[0].mxu0
      %886 = vmatprep.mubr.bf16.mxu0 0
      %887 = vmatmul.mubr.bf16.gmra.mrb[0].mxu0 %v519
      %v888 = vpop.f32.mrb[0].mxu0
      %v889 = vadd.f32 %v294, %v888
      %v890 = vpop.f32.mrb[0].mxu0
      %v891 = vpop.f32.mrb[0].mxu0
      %v892 = vadd.f32 %v294, %v891
      %v893 = vpop.f32.mrb[0].mxu0
      %894 = vmatprep.mubr.bf16.mxu0 0
      %895 = vmatmul.mubr.bf16.gmra.mrb[0].mxu0 %v520
      %v896 = vpop.f32.mrb[0].mxu0
      %v897 = vadd.f32 %v294, %v896
      %v898 = vpop.f32.mrb[0].mxu0
      %v899 = vpop.f32.mrb[0].mxu0
      %v900 = vadd.f32 %v294, %v899
      %v901 = vpop.f32.mrb[0].mxu0
      %902 = vmatprep.mubr.bf16.mxu0 0
      %903 = vmatmul.mubr.bf16.gmra.mrb[0].mxu0 %v521
      %v904 = vpop.f32.mrb[0].mxu0
      %v905 = vadd.f32 %v294, %v904
      %v906 = vpop.f32.mrb[0].mxu0
      %v907 = vpop.f32.mrb[0].mxu0
      %v908 = vadd.f32 %v294, %v907
      %v909 = vpop.f32.mrb[0].mxu0
      %910 = vmatprep.mubr.bf16.mxu0 0
      %911 = vmatmul.mubr.bf16.gmra.mrb[0].mxu0 %v522
      %v912 = vpop.f32.mrb[0].mxu0
      %v913 = vadd.f32 %v294, %v912
      %v914 = vpop.f32.mrb[0].mxu0
      %v915 = vpop.f32.mrb[0].mxu0
      %v916 = vadd.f32 %v294, %v915
      %v917 = vpop.f32.mrb[0].mxu0
      %918 = vmatprep.mubr.bf16.mxu0 0
      %919 = vmatmul.mubr.bf16.gmra.mrb[0].mxu0 %v523
      %v920 = vpop.f32.mrb[0].mxu0
      %v921 = vadd.f32 %v294, %v920
      %v922 = vpop.f32.mrb[0].mxu0
      %v923 = vpop.f32.mrb[0].mxu0
      %v924 = vadd.f32 %v294, %v923
      %v925 = vpop.f32.mrb[0].mxu0
      %926 = vmatprep.mubr.bf16.mxu0 0
      %927 = vmatmul.mubr.bf16.gmra.mrb[0].mxu0 %v524
      %v928 = vpop.f32.mrb[0].mxu0
      %v929 = vadd.f32 %v294, %v928
      %v930 = vpop.f32.mrb[0].mxu0
      %v931 = vpop.f32.mrb[0].mxu0
      %v932 = vadd.f32 %v294, %v931
      %v933 = vpop.f32.mrb[0].mxu0
      %934 = vmatprep.mubr.bf16.mxu0 0
      %935 = vmatmul.mubr.bf16.gmra.mrb[0].mxu0 %v525
      %v936 = vpop.f32.mrb[0].mxu0
      %v937 = vadd.f32 %v294, %v936
      %v938 = vpop.f32.mrb[0].mxu0
      %v939 = vpop.f32.mrb[0].mxu0
      %v940 = vadd.f32 %v294, %v939
      %v941 = vpop.f32.mrb[0].mxu0
      %942 = vmatprep.mubr.bf16.mxu0 0
      %943 = vmatmul.mubr.bf16.gmra.mrb[0].mxu0 %v526
      %v944 = vpop.f32.mrb[0].mxu0
      %v945 = vadd.f32 %v294, %v944
      %v946 = vpop.f32.mrb[0].mxu0
      %v947 = vpop.f32.mrb[0].mxu0
      %v948 = vadd.f32 %v294, %v947
      %v949 = vpop.f32.mrb[0].mxu0
      %950 = vmatprep.mubr.bf16.mxu0 0
      %951 = vmatmul.mubr.bf16.gmra.mrb[0].mxu0 %v527
      %v952 = vpop.f32.mrb[0].mxu0
      %v953 = vadd.f32 %v294, %v952
      %v954 = vpop.f32.mrb[0].mxu0
      %v955 = vpop.f32.mrb[0].mxu0
      %v956 = vadd.f32 %v294, %v955
      %v957 = vpop.f32.mrb[0].mxu0
      %958 = vmatprep.mubr.bf16.mxu0 0
      %959 = vmatmul.mubr.bf16.gmra.mrb[0].mxu0 %v528
      %v960 = vpop.f32.mrb[0].mxu0
      %v961 = vadd.f32 %v294, %v960
      %v962 = vpop.f32.mrb[0].mxu0
      %v963 = vpop.f32.mrb[0].mxu0
      %v964 = vadd.f32 %v294, %v963
      %v965 = vpop.f32.mrb[0].mxu0
      %966 = vmatprep.mubr.bf16.mxu0 0
      %967 = vmatmul.mubr.bf16.gmra.mrb[0].mxu0 %v529
      %v968 = vpop.f32.mrb[0].mxu0
      %v969 = vadd.f32 %v294, %v968
      %v970 = vpop.f32.mrb[0].mxu0
      %v971 = vpop.f32.mrb[0].mxu0
      %v972 = vadd.f32 %v294, %v971
      %v973 = vpop.f32.mrb[0].mxu0
      %974 = vmatprep.mubr.bf16.mxu0 0
      %975 = vmatmul.mubr.bf16.gmra.mrb[0].mxu0 %v530
      %v976 = vpop.f32.mrb[0].mxu0
      %v977 = vadd.f32 %v294, %v976
      %v978 = vpop.f32.mrb[0].mxu0
      %v979 = vpop.f32.mrb[0].mxu0
      %v980 = vadd.f32 %v294, %v979
      %v981 = vpop.f32.mrb[0].mxu0
      %982 = vmatprep.mubr.bf16.mxu0 0
      %983 = vmatmul.mubr.bf16.gmra.mrb[0].mxu0 %v531
      %v984 = vpop.f32.mrb[0].mxu0
      %v985 = vadd.f32 %v294, %v984
      %v986 = vpop.f32.mrb[0].mxu0
      %v987 = vpop.f32.mrb[0].mxu0
      %v988 = vadd.f32 %v294, %v987
      %v989 = vpop.f32.mrb[0].mxu0
      %990 = vmatprep.mubr.bf16.mxu0 0
      %991 = vmatmul.mubr.bf16.gmra.mrb[0].mxu0 %v532
      %v992 = vpop.f32.mrb[0].mxu0
      %v993 = vadd.f32 %v294, %v992
      %v994 = vpop.f32.mrb[0].mxu0
      %v995 = vpop.f32.mrb[0].mxu0
      %v996 = vadd.f32 %v294, %v995
      %v997 = vpop.f32.mrb[0].mxu0
      %998 = vmatprep.mubr.bf16.mxu0 0
      %999 = vmatmul.mubr.bf16.gmra.mrb[0].mxu0 %v533
      %v1000 = vpop.f32.mrb[0].mxu0
      %v1001 = vadd.f32 %v294, %v1000
      %v1002 = vpop.f32.mrb[0].mxu0
      %v1003 = vpop.f32.mrb[0].mxu0
      %v1004 = vadd.f32 %v294, %v1003
      %v1005 = vpop.f32.mrb[0].mxu0
      %1006 = vmatprep.mubr.bf16.mxu0 0
      %1007 = vmatmul.mubr.bf16.gmra.mrb[0].mxu0 %v534
      %v1008 = vpop.f32.mrb[0].mxu0
      %v1009 = vadd.f32 %v294, %v1008
      %v1010 = vpop.f32.mrb[0].mxu0
      %v1011 = vpop.f32.mrb[0].mxu0
      %v1012 = vadd.f32 %v294, %v1011
      %v1013 = vpop.f32.mrb[0].mxu0
      %1014 = vmatprep.mubr.bf16.mxu0 0
      %1015 = vmatmul.mubr.bf16.gmra.mrb[0].mxu0 %v535
      %v1016 = vpop.f32.mrb[0].mxu0
      %v1017 = vadd.f32 %v294, %v1016
      %v1018 = vpop.f32.mrb[0].mxu0
      %v1019 = vpop.f32.mrb[0].mxu0
      %v1020 = vadd.f32 %v294, %v1019
      %v1021 = vpop.f32.mrb[0].mxu0
      %1022 = vmatprep.mubr.bf16.mxu0 0
      %1023 = vmatmul.mubr.bf16.gmra.mrb[0].mxu0 %v536
      %v1024 = vpop.f32.mrb[0].mxu0
      %v1025 = vadd.f32 %v294, %v1024
      %v1026 = vpop.f32.mrb[0].mxu0
      %v1027 = vpop.f32.mrb[0].mxu0
      %v1028 = vadd.f32 %v294, %v1027
      %v1029 = vpop.f32.mrb[0].mxu0
      %1030 = vmatprep.mubr.bf16.mxu0 0
      %1031 = vmatmul.mubr.bf16.gmra.mrb[0].mxu0 %v537
      %v1032 = vpop.f32.mrb[0].mxu0
      %v1033 = vadd.f32 %v294, %v1032
      %v1034 = vpop.f32.mrb[0].mxu0
      %v1035 = vpop.f32.mrb[0].mxu0
      %v1036 = vadd.f32 %v294, %v1035
      %v1037 = vpop.f32.mrb[0].mxu0
      %1038 = vmatprep.mubr.bf16.mxu0 0
      %1039 = vmatmul.mubr.bf16.gmra.mrb[0].mxu0 %v538
      %v1040 = vpop.f32.mrb[0].mxu0
      %v1041 = vadd.f32 %v294, %v1040
      %v1042 = vpop.f32.mrb[0].mxu0
      %v1043 = vpop.f32.mrb[0].mxu0
      %v1044 = vadd.f32 %v294, %v1043
      %v1045 = vpop.f32.mrb[0].mxu0
      %1046 = vmatprep.mubr.bf16.mxu0 0
      %1047 = vmatmul.mubr.bf16.gmra.mrb[0].mxu0 %v539
      %v1048 = vpop.f32.mrb[0].mxu0
      %v1049 = vadd.f32 %v294, %v1048
      %v1050 = vpop.f32.mrb[0].mxu0
      %v1051 = vpop.f32.mrb[0].mxu0
      %v1052 = vadd.f32 %v294, %v1051
      %v1053 = vpop.f32.mrb[0].mxu0
      %1054 = vmatprep.mubr.bf16.mxu0 0
      %1055 = vmatmul.mubr.bf16.gmra.mrb[0].mxu0 %v540
      %v1056 = vpop.f32.mrb[0].mxu0
      %v1057 = vadd.f32 %v294, %v1056
      %v1058 = vpop.f32.mrb[0].mxu0
      %v1059 = vpop.f32.mrb[0].mxu0
      %v1060 = vadd.f32 %v294, %v1059
      %v1061 = vpop.f32.mrb[0].mxu0
      %1062 = vdwg.mxu0
      %v1063 = vmax.f32 %v673, 0.0
      %v1064 = vmax.f32 %v676, 0.0
      %v1065 = vmax.f32 %v681, 0.0
      %v1066 = vmax.f32 %v684, 0.0
      %v1067 = vmax.f32 %v689, 0.0
      %v1068 = vmax.f32 %v692, 0.0
      %v1069 = vmax.f32 %v697, 0.0
      %v1070 = vmax.f32 %v700, 0.0
      %v1071 = vmax.f32 %v705, 0.0
      %v1072 = vmax.f32 %v708, 0.0
      %v1073 = vmax.f32 %v713, 0.0
      %v1074 = vmax.f32 %v716, 0.0
      %v1075 = vmax.f32 %v721, 0.0
      %v1076 = vmax.f32 %v724, 0.0
      %v1077 = vmax.f32 %v729, 0.0
      %v1078 = vmax.f32 %v732, 0.0
      %v1079 = vmax.f32 %v737, 0.0
      %v1080 = vmax.f32 %v740, 0.0
      %v1081 = vmax.f32 %v745, 0.0
      %v1082 = vmax.f32 %v748, 0.0
      %v1083 = vmax.f32 %v753, 0.0
      %v1084 = vmax.f32 %v756, 0.0
      %v1085 = vmax.f32 %v761, 0.0
      %v1086 = vmax.f32 %v764, 0.0
      %v1087 = vmax.f32 %v769, 0.0
      %v1088 = vmax.f32 %v772, 0.0
      %v1089 = vmax.f32 %v777, 0.0
      %v1090 = vmax.f32 %v780, 0.0
      %v1091 = vmax.f32 %v785, 0.0
      %v1092 = vmax.f32 %v788, 0.0
      %v1093 = vmax.f32 %v793, 0.0
      %v1094 = vmax.f32 %v796, 0.0
      %v1095 = vmax.f32 %v801, 0.0
      %v1096 = vmax.f32 %v804, 0.0
      %v1097 = vmax.f32 %v809, 0.0
      %v1098 = vmax.f32 %v812, 0.0
      %v1099 = vmax.f32 %v817, 0.0
      %v1100 = vmax.f32 %v820, 0.0
      %v1101 = vmax.f32 %v825, 0.0
      %v1102 = vmax.f32 %v828, 0.0
      %v1103 = vmax.f32 %v833, 0.0
      %v1104 = vmax.f32 %v836, 0.0
      %v1105 = vmax.f32 %v841, 0.0
      %v1106 = vmax.f32 %v844, 0.0
      %v1107 = vmax.f32 %v849, 0.0
      %v1108 = vmax.f32 %v852, 0.0
      %v1109 = vmax.f32 %v857, 0.0
      %v1110 = vmax.f32 %v860, 0.0
      %v1111 = vmax.f32 %v865, 0.0
      %v1112 = vmax.f32 %v868, 0.0
      %v1113 = vmax.f32 %v873, 0.0
      %v1114 = vmax.f32 %v876, 0.0
      %v1115 = vmax.f32 %v881, 0.0
      %v1116 = vmax.f32 %v884, 0.0
      %v1117 = vmax.f32 %v889, 0.0
      %v1118 = vmax.f32 %v892, 0.0
      %v1119 = vmax.f32 %v897, 0.0
      %v1120 = vmax.f32 %v900, 0.0
      %v1121 = vmax.f32 %v905, 0.0
      %v1122 = vmax.f32 %v908, 0.0
      %v1123 = vmax.f32 %v913, 0.0
      %v1124 = vmax.f32 %v916, 0.0
      %v1125 = vmax.f32 %v921, 0.0
      %v1126 = vmax.f32 %v924, 0.0
      %v1127 = vmax.f32 %v929, 0.0
      %v1128 = vmax.f32 %v932, 0.0
      %v1129 = vmax.f32 %v937, 0.0
      %v1130 = vmax.f32 %v940, 0.0
      %v1131 = vmax.f32 %v945, 0.0
      %v1132 = vmax.f32 %v948, 0.0
      %v1133 = vmax.f32 %v953, 0.0
      %v1134 = vmax.f32 %v956, 0.0
      %v1135 = vmax.f32 %v961, 0.0
      %v1136 = vmax.f32 %v964, 0.0
      %v1137 = vmax.f32 %v969, 0.0
      %v1138 = vmax.f32 %v972, 0.0
      %v1139 = vmax.f32 %v977, 0.0
      %v1140 = vmax.f32 %v980, 0.0
      %v1141 = vmax.f32 %v985, 0.0
      %v1142 = vmax.f32 %v988, 0.0
      %v1143 = vmax.f32 %v993, 0.0
      %v1144 = vmax.f32 %v996, 0.0
      %v1145 = vmax.f32 %v1001, 0.0
      %v1146 = vmax.f32 %v1004, 0.0
      %v1147 = vmax.f32 %v1009, 0.0
      %v1148 = vmax.f32 %v1012, 0.0
      %v1149 = vmax.f32 %v1017, 0.0
      %v1150 = vmax.f32 %v1020, 0.0
      %v1151 = vmax.f32 %v1025, 0.0
      %v1152 = vmax.f32 %v1028, 0.0
      %v1153 = vmax.f32 %v1033, 0.0
      %v1154 = vmax.f32 %v1036, 0.0
      %v1155 = vmax.f32 %v1041, 0.0
      %v1156 = vmax.f32 %v1044, 0.0
      %v1157 = vmax.f32 %v1049, 0.0
      %v1158 = vmax.f32 %v1052, 0.0
      %v1159 = vmax.f32 %v1057, 0.0
      %v1160 = vmax.f32 %v1060, 0.0
      %v1161 = vpack.c.bf16 %v1064, %v1063
      %v1162 = vpack.c.bf16 %v1066, %v1065
      %v1163 = vpack.c.bf16 %v1068, %v1067
      %v1164 = vpack.c.bf16 %v1070, %v1069
      %v1165 = vpack.c.bf16 %v1072, %v1071
      %v1166 = vpack.c.bf16 %v1074, %v1073
      %v1167 = vpack.c.bf16 %v1076, %v1075
      %v1168 = vpack.c.bf16 %v1078, %v1077
      %v1169 = vpack.c.bf16 %v1080, %v1079
      %v1170 = vpack.c.bf16 %v1082, %v1081
      %v1171 = vpack.c.bf16 %v1084, %v1083
      %v1172 = vpack.c.bf16 %v1086, %v1085
      %v1173 = vpack.c.bf16 %v1088, %v1087
      %v1174 = vpack.c.bf16 %v1090, %v1089
      %v1175 = vpack.c.bf16 %v1092, %v1091
      %v1176 = vpack.c.bf16 %v1094, %v1093
      %v1177 = vpack.c.bf16 %v1096, %v1095
      %v1178 = vpack.c.bf16 %v1098, %v1097
      %v1179 = vpack.c.bf16 %v1100, %v1099
      %v1180 = vpack.c.bf16 %v1102, %v1101
      %v1181 = vpack.c.bf16 %v1104, %v1103
      %v1182 = vpack.c.bf16 %v1106, %v1105
      %v1183 = vpack.c.bf16 %v1108, %v1107
      %v1184 = vpack.c.bf16 %v1110, %v1109
      %v1185 = vpack.c.bf16 %v1112, %v1111
      %v1186 = vpack.c.bf16 %v1114, %v1113
      %v1187 = vpack.c.bf16 %v1116, %v1115
      %v1188 = vpack.c.bf16 %v1118, %v1117
      %v1189 = vpack.c.bf16 %v1120, %v1119
      %v1190 = vpack.c.bf16 %v1122, %v1121
      %v1191 = vpack.c.bf16 %v1124, %v1123
      %v1192 = vpack.c.bf16 %v1126, %v1125
      %v1193 = vpack.c.bf16 %v1128, %v1127
      %v1194 = vpack.c.bf16 %v1130, %v1129
      %v1195 = vpack.c.bf16 %v1132, %v1131
      %v1196 = vpack.c.bf16 %v1134, %v1133
      %v1197 = vpack.c.bf16 %v1136, %v1135
      %v1198 = vpack.c.bf16 %v1138, %v1137
      %v1199 = vpack.c.bf16 %v1140, %v1139
      %v1200 = vpack.c.bf16 %v1142, %v1141
      %v1201 = vpack.c.bf16 %v1144, %v1143
      %v1202 = vpack.c.bf16 %v1146, %v1145
      %v1203 = vpack.c.bf16 %v1148, %v1147
      %v1204 = vpack.c.bf16 %v1150, %v1149
      %v1205 = vpack.c.bf16 %v1152, %v1151
      %v1206 = vpack.c.bf16 %v1154, %v1153
      %v1207 = vpack.c.bf16 %v1156, %v1155
      %v1208 = vpack.c.bf16 %v1158, %v1157
      %v1209 = vpack.c.bf16 %v1160, %v1159
      %v1259 = vunpack.c.l.b16 %v1161
      %v1260 = vunpack.c.h.b16 %v1161
      %v1261 = vunpack.c.l.b16 %v1162
      %v1262 = vunpack.c.h.b16 %v1162
      %v1263 = vunpack.c.l.b16 %v1163
      %v1264 = vunpack.c.h.b16 %v1163
      %v1265 = vunpack.c.l.b16 %v1164
      %v1266 = vunpack.c.h.b16 %v1164
      %v1267 = vunpack.c.l.b16 %v1165
      %v1268 = vunpack.c.h.b16 %v1165
      %v1269 = vunpack.c.l.b16 %v1166
      %v1270 = vunpack.c.h.b16 %v1166
      %v1271 = vunpack.c.l.b16 %v1167
      %v1272 = vunpack.c.h.b16 %v1167
      %v1273 = vunpack.c.l.b16 %v1168
      %v1274 = vunpack.c.h.b16 %v1168
      %v1275 = vunpack.c.l.b16 %v1169
      %v1276 = vunpack.c.h.b16 %v1169
      %v1277 = vunpack.c.l.b16 %v1170
      %v1278 = vunpack.c.h.b16 %v1170
      %v1279 = vunpack.c.l.b16 %v1171
      %v1280 = vunpack.c.h.b16 %v1171
      %v1281 = vunpack.c.l.b16 %v1172
      %v1282 = vunpack.c.h.b16 %v1172
      %v1283 = vunpack.c.l.b16 %v1173
      %v1284 = vunpack.c.h.b16 %v1173
      %v1285 = vunpack.c.l.b16 %v1174
      %v1286 = vunpack.c.h.b16 %v1174
      %v1287 = vunpack.c.l.b16 %v1175
      %v1288 = vunpack.c.h.b16 %v1175
      %v1289 = vunpack.c.l.b16 %v1176
      %v1290 = vunpack.c.h.b16 %v1176
      %v1291 = vunpack.c.l.b16 %v1177
      %v1292 = vunpack.c.h.b16 %v1177
      %v1293 = vunpack.c.l.b16 %v1178
      %v1294 = vunpack.c.h.b16 %v1178
      %v1295 = vunpack.c.l.b16 %v1179
      %v1296 = vunpack.c.h.b16 %v1179
      %v1297 = vunpack.c.l.b16 %v1180
      %v1298 = vunpack.c.h.b16 %v1180
      %v1299 = vunpack.c.l.b16 %v1181
      %v1300 = vunpack.c.h.b16 %v1181
      %v1301 = vunpack.c.l.b16 %v1182
      %v1302 = vunpack.c.h.b16 %v1182
      %v1303 = vunpack.c.l.b16 %v1183
      %v1304 = vunpack.c.h.b16 %v1183
      %v1305 = vunpack.c.l.b16 %v1184
      %v1306 = vunpack.c.h.b16 %v1184
      %v1307 = vunpack.c.l.b16 %v1185
      %v1308 = vunpack.c.h.b16 %v1185
      %v1309 = vunpack.c.l.b16 %v1186
      %v1310 = vunpack.c.h.b16 %v1186
      %v1311 = vunpack.c.l.b16 %v1187
      %v1312 = vunpack.c.h.b16 %v1187
      %v1313 = vunpack.c.l.b16 %v1188
      %v1314 = vunpack.c.h.b16 %v1188
      %v1315 = vunpack.c.l.b16 %v1189
      %v1316 = vunpack.c.h.b16 %v1189
      %v1317 = vunpack.c.l.b16 %v1190
      %v1318 = vunpack.c.h.b16 %v1190
      %v1319 = vunpack.c.l.b16 %v1191
      %v1320 = vunpack.c.h.b16 %v1191
      %v1321 = vunpack.c.l.b16 %v1192
      %v1322 = vunpack.c.h.b16 %v1192
      %v1323 = vunpack.c.l.b16 %v1193
      %v1324 = vunpack.c.h.b16 %v1193
      %v1325 = vunpack.c.l.b16 %v1194
      %v1326 = vunpack.c.h.b16 %v1194
      %v1327 = vunpack.c.l.b16 %v1195
      %v1328 = vunpack.c.h.b16 %v1195
      %v1329 = vunpack.c.l.b16 %v1196
      %v1330 = vunpack.c.h.b16 %v1196
      %v1331 = vunpack.c.l.b16 %v1197
      %v1332 = vunpack.c.h.b16 %v1197
      %v1333 = vunpack.c.l.b16 %v1198
      %v1334 = vunpack.c.h.b16 %v1198
      %v1335 = vunpack.c.l.b16 %v1199
      %v1336 = vunpack.c.h.b16 %v1199
      %v1337 = vunpack.c.l.b16 %v1200
      %v1338 = vunpack.c.h.b16 %v1200
      %v1339 = vunpack.c.l.b16 %v1201
      %v1340 = vunpack.c.h.b16 %v1201
      %v1341 = vunpack.c.l.b16 %v1202
      %v1342 = vunpack.c.h.b16 %v1202
      %v1343 = vunpack.c.l.b16 %v1203
      %v1344 = vunpack.c.h.b16 %v1203
      %v1345 = vunpack.c.l.b16 %v1204
      %v1346 = vunpack.c.h.b16 %v1204
      %v1347 = vunpack.c.l.b16 %v1205
      %v1348 = vunpack.c.h.b16 %v1205
      %v1349 = vunpack.c.l.b16 %v1206
      %v1350 = vunpack.c.h.b16 %v1206
      %v1351 = vunpack.c.l.b16 %v1207
      %v1352 = vunpack.c.h.b16 %v1207
      %v1353 = vunpack.c.l.b16 %v1208
      %v1354 = vunpack.c.h.b16 %v1208
      %v1355 = vunpack.c.l.b16 %v1209
      %v1356 = vunpack.c.h.b16 %v1209
      %v1357 = vpack.c.b16 %v1259, %v1259
      %v1358 = vpack.c.b16 %v1260, %v1260
      %v1359 = vpack.c.b16 %v1261, %v1261
      %v1360 = vpack.c.b16 %v1262, %v1262
      %v1361 = vpack.c.b16 %v1263, %v1263
      %v1362 = vpack.c.b16 %v1264, %v1264
      %v1363 = vpack.c.b16 %v1265, %v1265
      %v1364 = vpack.c.b16 %v1266, %v1266
      %v1365 = vpack.c.b16 %v1267, %v1267
      %v1366 = vpack.c.b16 %v1268, %v1268
      %v1367 = vpack.c.b16 %v1269, %v1269
      %v1368 = vpack.c.b16 %v1270, %v1270
      %v1369 = vpack.c.b16 %v1271, %v1271
      %v1370 = vpack.c.b16 %v1272, %v1272
      %v1371 = vpack.c.b16 %v1273, %v1273
      %v1372 = vpack.c.b16 %v1274, %v1274
      %v1373 = vpack.c.b16 %v1275, %v1275
      %v1374 = vpack.c.b16 %v1276, %v1276
      %v1375 = vpack.c.b16 %v1277, %v1277
      %v1376 = vpack.c.b16 %v1278, %v1278
      %v1377 = vpack.c.b16 %v1279, %v1279
      %v1378 = vpack.c.b16 %v1280, %v1280
      %v1379 = vpack.c.b16 %v1281, %v1281
      %v1380 = vpack.c.b16 %v1282, %v1282
      %v1381 = vpack.c.b16 %v1283, %v1283
      %v1382 = vpack.c.b16 %v1284, %v1284
      %v1383 = vpack.c.b16 %v1285, %v1285
      %v1384 = vpack.c.b16 %v1286, %v1286
      %v1385 = vpack.c.b16 %v1287, %v1287
      %v1386 = vpack.c.b16 %v1288, %v1288
      %v1387 = vpack.c.b16 %v1289, %v1289
      %v1388 = vpack.c.b16 %v1290, %v1290
      %v1389 = vpack.c.b16 %v1291, %v1291
      %v1390 = vpack.c.b16 %v1292, %v1292
      %v1391 = vpack.c.b16 %v1293, %v1293
      %v1392 = vpack.c.b16 %v1294, %v1294
      %v1393 = vpack.c.b16 %v1295, %v1295
      %v1394 = vpack.c.b16 %v1296, %v1296
      %v1395 = vpack.c.b16 %v1297, %v1297
      %v1396 = vpack.c.b16 %v1298, %v1298
      %v1397 = vpack.c.b16 %v1299, %v1299
      %v1398 = vpack.c.b16 %v1300, %v1300
      %v1399 = vpack.c.b16 %v1301, %v1301
      %v1400 = vpack.c.b16 %v1302, %v1302
      %v1401 = vpack.c.b16 %v1303, %v1303
      %v1402 = vpack.c.b16 %v1304, %v1304
      %v1403 = vpack.c.b16 %v1305, %v1305
      %v1404 = vpack.c.b16 %v1306, %v1306
      %v1405 = vpack.c.b16 %v1307, %v1307
      %v1406 = vpack.c.b16 %v1308, %v1308
      %v1407 = vpack.c.b16 %v1309, %v1309
      %v1408 = vpack.c.b16 %v1310, %v1310
      %v1409 = vpack.c.b16 %v1311, %v1311
      %v1410 = vpack.c.b16 %v1312, %v1312
      %v1411 = vpack.c.b16 %v1313, %v1313
      %v1412 = vpack.c.b16 %v1314, %v1314
      %v1413 = vpack.c.b16 %v1315, %v1315
      %v1414 = vpack.c.b16 %v1316, %v1316
      %v1415 = vpack.c.b16 %v1317, %v1317
      %v1416 = vpack.c.b16 %v1318, %v1318
      %v1417 = vpack.c.b16 %v1319, %v1319
      %v1418 = vpack.c.b16 %v1320, %v1320
      %v1419 = vpack.c.b16 %v1321, %v1321
      %v1420 = vpack.c.b16 %v1322, %v1322
      %v1421 = vpack.c.b16 %v1323, %v1323
      %v1422 = vpack.c.b16 %v1324, %v1324
      %v1423 = vpack.c.b16 %v1325, %v1325
      %v1424 = vpack.c.b16 %v1326, %v1326
      %v1425 = vpack.c.b16 %v1327, %v1327
      %v1426 = vpack.c.b16 %v1328, %v1328
      %v1427 = vpack.c.b16 %v1329, %v1329
      %v1428 = vpack.c.b16 %v1330, %v1330
      %v1429 = vpack.c.b16 %v1331, %v1331
      %v1430 = vpack.c.b16 %v1332, %v1332
      %v1431 = vpack.c.b16 %v1333, %v1333
      %v1432 = vpack.c.b16 %v1334, %v1334
      %v1433 = vpack.c.b16 %v1335, %v1335
      %v1434 = vpack.c.b16 %v1336, %v1336
      %v1435 = vpack.c.b16 %v1337, %v1337
      %v1436 = vpack.c.b16 %v1338, %v1338
      %v1437 = vpack.c.b16 %v1339, %v1339
      %v1438 = vpack.c.b16 %v1340, %v1340
      %v1439 = vpack.c.b16 %v1341, %v1341
      %v1440 = vpack.c.b16 %v1342, %v1342
      %v1441 = vpack.c.b16 %v1343, %v1343
      %v1442 = vpack.c.b16 %v1344, %v1344
      %v1443 = vpack.c.b16 %v1345, %v1345
      %v1444 = vpack.c.b16 %v1346, %v1346
      %v1445 = vpack.c.b16 %v1347, %v1347
      %v1446 = vpack.c.b16 %v1348, %v1348
      %v1447 = vpack.c.b16 %v1349, %v1349
      %v1448 = vpack.c.b16 %v1350, %v1350
      %v1449 = vpack.c.b16 %v1351, %v1351
      %v1450 = vpack.c.b16 %v1352, %v1352
      %v1451 = vpack.c.b16 %v1353, %v1353
      %v1452 = vpack.c.b16 %v1354, %v1354
      %v1453 = vpack.c.b16 %v1355, %v1355
      %v1454 = vpack.c.b16 %v1356, %v1356
      %1553 = vst [vmem:[%s172] sm:$0xf] %v1357
      %1554 = vst [vmem:[%s172 + $0x4] sm:$0xf] %v1358
      %1555 = vst [vmem:[%s172 + $0x8] sm:$0xf] %v1359
      %1556 = vst [vmem:[%s172 + $0xc] sm:$0xf] %v1360
      %1557 = vst [vmem:[%s172 + $0x10] sm:$0xf] %v1361
      %1558 = vst [vmem:[%s172 + $0x14] sm:$0xf] %v1362
      %1559 = vst [vmem:[%s172 + $0x18] sm:$0xf] %v1363
      %1560 = vst [vmem:[%s172 + $0x1c] sm:$0xf] %v1364
      %1561 = vst [vmem:[%s172 + $0x20] sm:$0xf] %v1365
      %1562 = vst [vmem:[%s172 + $0x24] sm:$0xf] %v1366
      %1563 = vst [vmem:[%s172 + $0x28] sm:$0xf] %v1367
      %1564 = vst [vmem:[%s172 + $0x2c] sm:$0xf] %v1368
      %1565 = vst [vmem:[%s172 + $0x30] sm:$0xf] %v1369
      %1566 = vst [vmem:[%s172 + $0x34] sm:$0xf] %v1370
      %1567 = vst [vmem:[%s172 + $0x38] sm:$0xf] %v1371
      %1568 = vst [vmem:[%s172 + $0x3c] sm:$0xf] %v1372
      %1569 = vst [vmem:[%s172 + $0x40] sm:$0xf] %v1373
      %1570 = vst [vmem:[%s172 + $0x44] sm:$0xf] %v1374
      %1571 = vst [vmem:[%s172 + $0x48] sm:$0xf] %v1375
      %1572 = vst [vmem:[%s172 + $0x4c] sm:$0xf] %v1376
      %1573 = vst [vmem:[%s172 + $0x50] sm:$0xf] %v1377
      %1574 = vst [vmem:[%s172 + $0x54] sm:$0xf] %v1378
      %1575 = vst [vmem:[%s172 + $0x58] sm:$0xf] %v1379
      %1576 = vst [vmem:[%s172 + $0x5c] sm:$0xf] %v1380
      %1577 = vst [vmem:[%s172 + $0x60] sm:$0xf] %v1381
      %1578 = vst [vmem:[%s172 + $0x64] sm:$0xf] %v1382
      %1579 = vst [vmem:[%s172 + $0x68] sm:$0xf] %v1383
      %1580 = vst [vmem:[%s172 + $0x6c] sm:$0xf] %v1384
      %1581 = vst [vmem:[%s172 + $0x70] sm:$0xf] %v1385
      %1582 = vst [vmem:[%s172 + $0x74] sm:$0xf] %v1386
      %1583 = vst [vmem:[%s172 + $0x78] sm:$0xf] %v1387
      %1584 = vst [vmem:[%s172 + $0x7c] sm:$0xf] %v1388
      %1585 = vst [vmem:[%s172 + $0x80] sm:$0xf] %v1389
      %1586 = vst [vmem:[%s172 + $0x84] sm:$0xf] %v1390
      %1587 = vst [vmem:[%s172 + $0x88] sm:$0xf] %v1391
      %1588 = vst [vmem:[%s172 + $0x8c] sm:$0xf] %v1392
      %1589 = vst [vmem:[%s172 + $0x90] sm:$0xf] %v1393
      %1590 = vst [vmem:[%s172 + $0x94] sm:$0xf] %v1394
      %1591 = vst [vmem:[%s172 + $0x98] sm:$0xf] %v1395
      %1592 = vst [vmem:[%s172 + $0x9c] sm:$0xf] %v1396
      %1593 = vst [vmem:[%s172 + $0xa0] sm:$0xf] %v1397
      %1594 = vst [vmem:[%s172 + $0xa4] sm:$0xf] %v1398
      %1595 = vst [vmem:[%s172 + $0xa8] sm:$0xf] %v1399
      %1596 = vst [vmem:[%s172 + $0xac] sm:$0xf] %v1400
      %1597 = vst [vmem:[%s172 + $0xb0] sm:$0xf] %v1401
      %1598 = vst [vmem:[%s172 + $0xb4] sm:$0xf] %v1402
      %1599 = vst [vmem:[%s172 + $0xb8] sm:$0xf] %v1403
      %1600 = vst [vmem:[%s172 + $0xbc] sm:$0xf] %v1404
      %1601 = vst [vmem:[%s172 + $0xc0] sm:$0xf] %v1405
      %1602 = vst [vmem:[%s172 + $0xc4] sm:$0xf] %v1406
      %1603 = vst [vmem:[%s172 + $0xc8] sm:$0xf] %v1407
      %1604 = vst [vmem:[%s172 + $0xcc] sm:$0xf] %v1408
      %1605 = vst [vmem:[%s172 + $0xd0] sm:$0xf] %v1409
      %1606 = vst [vmem:[%s172 + $0xd4] sm:$0xf] %v1410
      %1607 = vst [vmem:[%s172 + $0xd8] sm:$0xf] %v1411
      %1608 = vst [vmem:[%s172 + $0xdc] sm:$0xf] %v1412
      %1609 = vst [vmem:[%s172 + $0xe0] sm:$0xf] %v1413
      %1610 = vst [vmem:[%s172 + $0xe4] sm:$0xf] %v1414
      %1611 = vst [vmem:[%s172 + $0xe8] sm:$0xf] %v1415
      %1612 = vst [vmem:[%s172 + $0xec] sm:$0xf] %v1416
      %1613 = vst [vmem:[%s172 + $0xf0] sm:$0xf] %v1417
      %1614 = vst [vmem:[%s172 + $0xf4] sm:$0xf] %v1418
      %1615 = vst [vmem:[%s172 + $0xf8] sm:$0xf] %v1419
      %1616 = vst [vmem:[%s172 + $0xfc] sm:$0xf] %v1420
      %1617 = vst [vmem:[%s172 + $0x100] sm:$0xf] %v1421
      %1618 = vst [vmem:[%s172 + $0x104] sm:$0xf] %v1422
      %1619 = vst [vmem:[%s172 + $0x108] sm:$0xf] %v1423
      %1620 = vst [vmem:[%s172 + $0x10c] sm:$0xf] %v1424
      %1621 = vst [vmem:[%s172 + $0x110] sm:$0xf] %v1425
      %1622 = vst [vmem:[%s172 + $0x114] sm:$0xf] %v1426
      %1623 = vst [vmem:[%s172 + $0x118] sm:$0xf] %v1427
      %1624 = vst [vmem:[%s172 + $0x11c] sm:$0xf] %v1428
      %1625 = vst [vmem:[%s172 + $0x120] sm:$0xf] %v1429
      %1626 = vst [vmem:[%s172 + $0x124] sm:$0xf] %v1430
      %1627 = vst [vmem:[%s172 + $0x128] sm:$0xf] %v1431
      %1628 = vst [vmem:[%s172 + $0x12c] sm:$0xf] %v1432
      %1629 = vst [vmem:[%s172 + $0x130] sm:$0xf] %v1433
      %1630 = vst [vmem:[%s172 + $0x134] sm:$0xf] %v1434
      %1631 = vst [vmem:[%s172 + $0x138] sm:$0xf] %v1435
      %1632 = vst [vmem:[%s172 + $0x13c] sm:$0xf] %v1436
      %1633 = vst [vmem:[%s172 + $0x140] sm:$0xf] %v1437
      %1634 = vst [vmem:[%s172 + $0x144] sm:$0xf] %v1438
      %1635 = vst [vmem:[%s172 + $0x148] sm:$0xf] %v1439
      %1636 = vst [vmem:[%s172 + $0x14c] sm:$0xf] %v1440
      %1637 = vst [vmem:[%s172 + $0x150] sm:$0xf] %v1441
      %1638 = vst [vmem:[%s172 + $0x154] sm:$0xf] %v1442
      %1639 = vst [vmem:[%s172 + $0x158] sm:$0xf] %v1443
      %1640 = vst [vmem:[%s172 + $0x15c] sm:$0xf] %v1444
      %1641 = vst [vmem:[%s172 + $0x160] sm:$0xf] %v1445
      %1642 = vst [vmem:[%s172 + $0x164] sm:$0xf] %v1446
      %1643 = vst [vmem:[%s172 + $0x168] sm:$0xf] %v1447
      %1644 = vst [vmem:[%s172 + $0x16c] sm:$0xf] %v1448
      %1645 = vst [vmem:[%s172 + $0x170] sm:$0xf] %v1449
      %1646 = vst [vmem:[%s172 + $0x174] sm:$0xf] %v1450
      %1647 = vst [vmem:[%s172 + $0x178] sm:$0xf] %v1451
      %1648 = vst [vmem:[%s172 + $0x17c] sm:$0xf] %v1452
      %1649 = vst [vmem:[%s172 + $0x180] sm:$0xf] %v1453
      %1650 = vst [vmem:[%s172 + $0x184] sm:$0xf] %v1454
      %s1651 = smul.u32 98, %s14
      %p1652 = scmp.lt.s32.totalorder %s1651, 195
      %s1653 = scalar_select %p1652, %s1651, 195
      %s1654 = smul.addr %s1653, 4
      %s1655 = scalar_lea.vmem %s3, %s1654
      // Predicated region
      $region33: #{mixer_forward.3} parent=31 // pred_check
        %p1656 = pneg %p100
      $region34: #{mixer_forward.3} parent=31 // pred_check_branch
        %1658 = sbr.rel (%p1656) target = $region36
      $region35: #{mixer_forward.3} parent=31 // pred_region
        %s1659 = smul.u32 98, %s14
      $region36: #{mixer_forward.3} parent=31 // pred_fallthru
        _
    $region32: #{mixer_forward.3} parent=5 // pred_fallthru
      _
    %p1660 = scmp.le.s32.totalorder 2, %s9
    // Predicated region
    $region37: #{mixer_forward.3} parent=5 // pred_check
      %p1661 = pneg %p1660
    $region38: #{mixer_forward.3} parent=5 // pred_check_branch
      %1663 = sbr.rel (%p1661) target = $region40
    $region39: #{mixer_forward.3} parent=5 // pred_region
      %s1664 = ssub.s32 %s9, 2
      // Predicated region
      $region41: #{mixer_forward.3} parent=39 // pred_check
        %p1665 = pneg %p106
      $region42: #{mixer_forward.3} parent=39 // pred_check_branch
        %1667 = sbr.rel (%p1665) target = $region44
      $region43: #{mixer_forward.3} parent=39 // pred_region
        %s1668 = smul.u32 98, %s15
        %p1669 = scmp.lt.s32.totalorder %s1668, 195
        %s1670 = scalar_select %p1669, %s1668, 195
        %s1671 = smul.addr %s1670, 4
        %s1672 = scalar_lea.vmem %s3, %s1671
      $region44: #{mixer_forward.3} parent=39 // pred_fallthru
        _
    $region40: #{mixer_forward.3} parent=5 // pred_fallthru
      _
  $region6: #{mixer_forward.3} parent=0 // loop_footer
    %s13 = sadd.s32 1, %s9
  $region7: #{mixer_forward.3} parent=0 // loop_footer_branch
    %8 = sbr.rel target = $region3
  $region8: #{mixer_forward.3} parent=0 // loop_exit
    _

// kernel: mixer_forward.4
$region0: #{mixer_forward.4}
  #allocation0 [shape = 'u32[]', space=smem, size = 0x4, offset = 0x4, fixed_abs, tag = 'smem constant byte address 0x4 - core index']
  #allocation1 [shape = 'u32[144,128]{1,0:T(1,128)}', space=vmem, size = 0x12000, scoped, tag = 'internal scratch']
  %s0 = inlined_call_operand.vmem [shape: bf16[200,512], index: 0, kind: input, shape index: {}]
  %s1 = inlined_call_operand.vmem [shape: bf16[512,128], index: 1, kind: input, shape index: {}]
  %s2 = inlined_call_operand.vmem [shape: f32[1,128], index: 2, kind: input, shape index: {}]
  %s3 = inlined_call_operand.vmem [shape: bf16[200,128], index: 3, kind: output, shape index: {}]
  %s4 = sld [smem:[#allocation0]]
  $region22: #{mixer_forward.4} parent=0
    _
  %s6 = ssub.s32 1, %s4
  %s7 = scalar_select 0, %s6, %s4
  // Predicated region
  $region2: #{mixer_forward.4} parent=0 // pred_check
    _
  $region3: #{mixer_forward.4} parent=0 // pred_check_branch
    %9 = sbr.rel (0) target = $region5
  $region4: #{mixer_forward.4} parent=0 // pred_region
    _
  $region5: #{mixer_forward.4} parent=0 // pred_fallthru
    _
  // Predicated region
  $region6: #{mixer_forward.4} parent=0 // pred_check
    _
  $region7: #{mixer_forward.4} parent=0 // pred_check_branch
    %11 = sbr.rel (0) target = $region9
  $region8: #{mixer_forward.4} parent=0 // pred_region
    _
  $region9: #{mixer_forward.4} parent=0 // pred_fallthru
    _
  // Predicated region
  $region10: #{mixer_forward.4} parent=0 // pred_check
    _
  $region11: #{mixer_forward.4} parent=0 // pred_check_branch
    %13 = sbr.rel (0) target = $region13
  $region12: #{mixer_forward.4} parent=0 // pred_region
    _
  $region13: #{mixer_forward.4} parent=0 // pred_fallthru
    _
  %v15 = vld [vmem:[%s0] sm:$0xff]
  %v16 = vld [vmem:[%s0 + $0x8] sm:$0xff]
  %v17 = vld [vmem:[%s0 + $0x10] sm:$0xff]
  %v18 = vld [vmem:[%s0 + $0x18] sm:$0xff]
  %v19 = vld [vmem:[%s0 + $0x20] sm:$0xff]
  %v20 = vld [vmem:[%s0 + $0x28] sm:$0xff]
  %v21 = vld [vmem:[%s0 + $0x30] sm:$0xff]
  %v22 = vld [vmem:[%s0 + $0x38] sm:$0xff]
  %v23 = vld [vmem:[%s0 + $0x40] sm:$0xff]
  %v24 = vld [vmem:[%s0 + $0x48] sm:$0xff]
  %v25 = vld [vmem:[%s0 + $0x50] sm:$0xff]
  %v26 = vld [vmem:[%s0 + $0x58] sm:$0xff]
  %v27 = vld [vmem:[%s0 + $0x60] sm:$0xff]
  %v28 = vld [vmem:[%s0 + $0x68] sm:$0xff]
  %v29 = vld [vmem:[%s0 + $0x70] sm:$0xff]
  %v30 = vld [vmem:[%s0 + $0x78] sm:$0xff]
  %v31 = vld [vmem:[%s0 + $0x80] sm:$0xff]
  %v32 = vld [vmem:[%s0 + $0x88] sm:$0xff]
  %v33 = vld [vmem:[%s0 + $0x90] sm:$0xff]
  %v34 = vld [vmem:[%s0 + $0x98] sm:$0xff]
  %v35 = vld [vmem:[%s0 + $0xa0] sm:$0xff]
  %v36 = vld [vmem:[%s0 + $0xa8] sm:$0xff]
  %v37 = vld [vmem:[%s0 + $0xb0] sm:$0xff]
  %v38 = vld [vmem:[%s0 + $0xb8] sm:$0xff]
  %v39 = vld [vmem:[%s0 + $0xc0] sm:$0xff]
  %v40 = vld [vmem:[%s0 + $0xc8] sm:$0xff]
  %v41 = vld [vmem:[%s0 + $0xd0] sm:$0xff]
  %v42 = vld [vmem:[%s0 + $0xd8] sm:$0xff]
  %v43 = vld [vmem:[%s0 + $0xe0] sm:$0xff]
  %v44 = vld [vmem:[%s0 + $0xe8] sm:$0xff]
  %v45 = vld [vmem:[%s0 + $0xf0] sm:$0xff]
  %v46 = vld [vmem:[%s0 + $0xf8] sm:$0xff]
  %v47 = vld [vmem:[%s0 + $0x100] sm:$0xff]
  %v48 = vld [vmem:[%s0 + $0x108] sm:$0xff]
  %v49 = vld [vmem:[%s0 + $0x110] sm:$0xff]
  %v50 = vld [vmem:[%s0 + $0x118] sm:$0xff]
  %v51 = vld [vmem:[%s0 + $0x120] sm:$0xff]
  %v52 = vld [vmem:[%s0 + $0x128] sm:$0xff]
  %v53 = vld [vmem:[%s0 + $0x130] sm:$0xff]
  %v54 = vld [vmem:[%s0 + $0x138] sm:$0xff]
  %v55 = vld [vmem:[%s0 + $0x140] sm:$0xff]
  %v56 = vld [vmem:[%s0 + $0x148] sm:$0xff]
  %v57 = vld [vmem:[%s0 + $0x150] sm:$0xff]
  %v58 = vld [vmem:[%s0 + $0x158] sm:$0xff]
  %v59 = vld [vmem:[%s0 + $0x160] sm:$0xff]
  %v60 = vld [vmem:[%s0 + $0x168] sm:$0xff]
  %v61 = vld [vmem:[%s0 + $0x170] sm:$0xff]
  %v62 = vld [vmem:[%s0 + $0x178] sm:$0xff]
  %v63 = vld [vmem:[%s0 + $0x180] sm:$0xff]
  %v64 = vld [vmem:[%s0 + $0x188] sm:$0xff]
  %v65 = vld [vmem:[%s1] sm:$0xf]
  %v66 = vld [vmem:[%s1 + $0x4] sm:$0xf]
  %v67 = vld [vmem:[%s1 + $0x8] sm:$0xf]
  %v68 = vld [vmem:[%s1 + $0xc] sm:$0xf]
  %v69 = vld [vmem:[%s1 + $0x10] sm:$0xf]
  %v70 = vld [vmem:[%s1 + $0x14] sm:$0xf]
  %v71 = vld [vmem:[%s1 + $0x18] sm:$0xf]
  %v72 = vld [vmem:[%s1 + $0x1c] sm:$0xf]
  %v73 = vld [vmem:[%s1 + $0x20] sm:$0xf]
  %v74 = vld [vmem:[%s1 + $0x24] sm:$0xf]
  %v75 = vld [vmem:[%s1 + $0x28] sm:$0xf]
  %v76 = vld [vmem:[%s1 + $0x2c] sm:$0xf]
  %v77 = vld [vmem:[%s1 + $0x30] sm:$0xf]
  %v78 = vld [vmem:[%s1 + $0x34] sm:$0xf]
  %v79 = vld [vmem:[%s1 + $0x38] sm:$0xf]
  %v80 = vld [vmem:[%s1 + $0x3c] sm:$0xf]
  %v81 = vld [vmem:[%s1 + $0x40] sm:$0xf]
  %v82 = vld [vmem:[%s1 + $0x44] sm:$0xf]
  %v83 = vld [vmem:[%s1 + $0x48] sm:$0xf]
  %v84 = vld [vmem:[%s1 + $0x4c] sm:$0xf]
  %v85 = vld [vmem:[%s1 + $0x50] sm:$0xf]
  %v86 = vld [vmem:[%s1 + $0x54] sm:$0xf]
  %v87 = vld [vmem:[%s1 + $0x58] sm:$0xf]
  %v88 = vld [vmem:[%s1 + $0x5c] sm:$0xf]
  %v89 = vld [vmem:[%s1 + $0x60] sm:$0xf]
  %v90 = vld [vmem:[%s1 + $0x64] sm:$0xf]
  %v91 = vld [vmem:[%s1 + $0x68] sm:$0xf]
  %v92 = vld [vmem:[%s1 + $0x6c] sm:$0xf]
  %v93 = vld [vmem:[%s1 + $0x70] sm:$0xf]
  %v94 = vld [vmem:[%s1 + $0x74] sm:$0xf]
  %v95 = vld [vmem:[%s1 + $0x78] sm:$0xf]
  %v96 = vld [vmem:[%s1 + $0x7c] sm:$0xf]
  %v97 = vld [vmem:[%s1 + $0x80] sm:$0xf]
  %v98 = vld [vmem:[%s1 + $0x84] sm:$0xf]
  %v99 = vld [vmem:[%s1 + $0x88] sm:$0xf]
  %v100 = vld [vmem:[%s1 + $0x8c] sm:$0xf]
  %v101 = vld [vmem:[%s1 + $0x90] sm:$0xf]
  %v102 = vld [vmem:[%s1 + $0x94] sm:$0xf]
  %v103 = vld [vmem:[%s1 + $0x98] sm:$0xf]
  %v104 = vld [vmem:[%s1 + $0x9c] sm:$0xf]
  %v105 = vld [vmem:[%s1 + $0xa0] sm:$0xf]
  %v106 = vld [vmem:[%s1 + $0xa4] sm:$0xf]
  %v107 = vld [vmem:[%s1 + $0xa8] sm:$0xf]
  %v108 = vld [vmem:[%s1 + $0xac] sm:$0xf]
  %v109 = vld [vmem:[%s1 + $0xb0] sm:$0xf]
  %v110 = vld [vmem:[%s1 + $0xb4] sm:$0xf]
  %v111 = vld [vmem:[%s1 + $0xb8] sm:$0xf]
  %v112 = vld [vmem:[%s1 + $0xbc] sm:$0xf]
  %v113 = vld [vmem:[%s1 + $0xc0] sm:$0xf]
  %v114 = vld [vmem:[%s1 + $0xc4] sm:$0xf]
  %v115 = vld [vmem:[%s1 + $0xc8] sm:$0xf]
  %v116 = vld [vmem:[%s1 + $0xcc] sm:$0xf]
  %v117 = vld [vmem:[%s1 + $0xd0] sm:$0xf]
  %v118 = vld [vmem:[%s1 + $0xd4] sm:$0xf]
  %v119 = vld [vmem:[%s1 + $0xd8] sm:$0xf]
  %v120 = vld [vmem:[%s1 + $0xdc] sm:$0xf]
  %v121 = vld [vmem:[%s1 + $0xe0] sm:$0xf]
  %v122 = vld [vmem:[%s1 + $0xe4] sm:$0xf]
  %v123 = vld [vmem:[%s1 + $0xe8] sm:$0xf]
  %v124 = vld [vmem:[%s1 + $0xec] sm:$0xf]
  %v125 = vld [vmem:[%s1 + $0xf0] sm:$0xf]
  %v126 = vld [vmem:[%s1 + $0xf4] sm:$0xf]
  %v127 = vld [vmem:[%s1 + $0xf8] sm:$0xf]
  %v128 = vld [vmem:[%s1 + $0xfc] sm:$0xf]
  %v129 = vld [vmem:[%s2] sm:$0x1]
  %v131 = vlaneseq
  %v132 = vshrl.u32 %v131, 7
  %v133 = vsub.s32 0, %v132
  %v134 = vrot.slane %v129, %v133
  %v186 = vunpack.c.l.b16 %v15
  %v187 = vunpack.c.h.b16 %v15
  %v188 = vunpack.c.l.b16 %v16
  %v189 = vunpack.c.h.b16 %v16
  %v190 = vunpack.c.l.b16 %v17
  %v191 = vunpack.c.h.b16 %v17
  %v192 = vunpack.c.l.b16 %v18
  %v193 = vunpack.c.h.b16 %v18
  %v194 = vunpack.c.l.b16 %v19
  %v195 = vunpack.c.h.b16 %v19
  %v196 = vunpack.c.l.b16 %v20
  %v197 = vunpack.c.h.b16 %v20
  %v198 = vunpack.c.l.b16 %v21
  %v199 = vunpack.c.h.b16 %v21
  %v200 = vunpack.c.l.b16 %v22
  %v201 = vunpack.c.h.b16 %v22
  %v202 = vunpack.c.l.b16 %v23
  %v203 = vunpack.c.h.b16 %v23
  %v204 = vunpack.c.l.b16 %v24
  %v205 = vunpack.c.h.b16 %v24
  %v206 = vunpack.c.l.b16 %v25
  %v207 = vunpack.c.h.b16 %v25
  %v208 = vunpack.c.l.b16 %v26
  %v209 = vunpack.c.h.b16 %v26
  %v210 = vunpack.c.l.b16 %v27
  %v211 = vunpack.c.h.b16 %v27
  %v212 = vunpack.c.l.b16 %v28
  %v213 = vunpack.c.h.b16 %v28
  %v214 = vunpack.c.l.b16 %v29
  %v215 = vunpack.c.h.b16 %v29
  %v216 = vunpack.c.l.b16 %v30
  %v217 = vunpack.c.h.b16 %v30
  %v218 = vunpack.c.l.b16 %v31
  %v219 = vunpack.c.h.b16 %v31
  %v220 = vunpack.c.l.b16 %v32
  %v221 = vunpack.c.h.b16 %v32
  %v222 = vunpack.c.l.b16 %v33
  %v223 = vunpack.c.h.b16 %v33
  %v224 = vunpack.c.l.b16 %v34
  %v225 = vunpack.c.h.b16 %v34
  %v226 = vunpack.c.l.b16 %v35
  %v227 = vunpack.c.h.b16 %v35
  %v228 = vunpack.c.l.b16 %v36
  %v229 = vunpack.c.h.b16 %v36
  %v230 = vunpack.c.l.b16 %v37
  %v231 = vunpack.c.h.b16 %v37
  %v232 = vunpack.c.l.b16 %v38
  %v233 = vunpack.c.h.b16 %v38
  %v234 = vunpack.c.l.b16 %v39
  %v235 = vunpack.c.h.b16 %v39
  %v236 = vunpack.c.l.b16 %v40
  %v237 = vunpack.c.h.b16 %v40
  %v238 = vunpack.c.l.b16 %v41
  %v239 = vunpack.c.h.b16 %v41
  %v240 = vunpack.c.l.b16 %v42
  %v241 = vunpack.c.h.b16 %v42
  %v242 = vunpack.c.l.b16 %v43
  %v243 = vunpack.c.h.b16 %v43
  %v244 = vunpack.c.l.b16 %v44
  %v245 = vunpack.c.h.b16 %v44
  %v246 = vunpack.c.l.b16 %v45
  %v247 = vunpack.c.h.b16 %v45
  %v248 = vunpack.c.l.b16 %v46
  %v249 = vunpack.c.h.b16 %v46
  %v250 = vunpack.c.l.b16 %v47
  %v251 = vunpack.c.h.b16 %v47
  %v252 = vunpack.c.l.b16 %v48
  %v253 = vunpack.c.h.b16 %v48
  %v254 = vunpack.c.l.b16 %v49
  %v255 = vunpack.c.h.b16 %v49
  %v256 = vunpack.c.l.b16 %v50
  %v257 = vunpack.c.h.b16 %v50
  %v258 = vunpack.c.l.b16 %v51
  %v259 = vunpack.c.h.b16 %v51
  %v260 = vunpack.c.l.b16 %v52
  %v261 = vunpack.c.h.b16 %v52
  %v262 = vunpack.c.l.b16 %v53
  %v263 = vunpack.c.h.b16 %v53
  %v264 = vunpack.c.l.b16 %v54
  %v265 = vunpack.c.h.b16 %v54
  %v266 = vunpack.c.l.b16 %v55
  %v267 = vunpack.c.h.b16 %v55
  %v268 = vunpack.c.l.b16 %v56
  %v269 = vunpack.c.h.b16 %v56
  %v270 = vunpack.c.l.b16 %v57
  %v271 = vunpack.c.h.b16 %v57
  %v272 = vunpack.c.l.b16 %v58
  %v273 = vunpack.c.h.b16 %v58
  %v274 = vunpack.c.l.b16 %v59
  %v275 = vunpack.c.h.b16 %v59
  %v276 = vunpack.c.l.b16 %v60
  %v277 = vunpack.c.h.b16 %v60
  %v278 = vunpack.c.l.b16 %v61
  %v279 = vunpack.c.h.b16 %v61
  %v280 = vunpack.c.l.b16 %v62
  %v281 = vunpack.c.h.b16 %v62
  %v282 = vunpack.c.l.b16 %v63
  %v283 = vunpack.c.h.b16 %v63
  %v284 = vunpack.c.l.b16 %v64
  %v285 = vunpack.c.h.b16 %v64
  %v286 = vpack.c.b16 %v190, %v186
  %v287 = vpack.c.b16 %v191, %v187
  %v288 = vpack.c.b16 %v192, %v188
  %v289 = vpack.c.b16 %v193, %v189
  %v290 = vpack.c.b16 %v198, %v194
  %v291 = vpack.c.b16 %v199, %v195
  %v292 = vpack.c.b16 %v200, %v196
  %v293 = vpack.c.b16 %v201, %v197
  %v294 = vpack.c.b16 %v206, %v202
  %v295 = vpack.c.b16 %v207, %v203
  %v296 = vpack.c.b16 %v208, %v204
  %v297 = vpack.c.b16 %v209, %v205
  %v298 = vpack.c.b16 %v214, %v210
  %v299 = vpack.c.b16 %v215, %v211
  %v300 = vpack.c.b16 %v216, %v212
  %v301 = vpack.c.b16 %v217, %v213
  %v302 = vpack.c.b16 %v222, %v218
  %v303 = vpack.c.b16 %v223, %v219
  %v304 = vpack.c.b16 %v224, %v220
  %v305 = vpack.c.b16 %v225, %v221
  %v306 = vpack.c.b16 %v230, %v226
  %v307 = vpack.c.b16 %v231, %v227
  %v308 = vpack.c.b16 %v232, %v228
  %v309 = vpack.c.b16 %v233, %v229
  %v310 = vpack.c.b16 %v238, %v234
  %v311 = vpack.c.b16 %v239, %v235
  %v312 = vpack.c.b16 %v240, %v236
  %v313 = vpack.c.b16 %v241, %v237
  %v314 = vpack.c.b16 %v246, %v242
  %v315 = vpack.c.b16 %v247, %v243
  %v316 = vpack.c.b16 %v248, %v244
  %v317 = vpack.c.b16 %v249, %v245
  %v318 = vpack.c.b16 %v254, %v250
  %v319 = vpack.c.b16 %v255, %v251
  %v320 = vpack.c.b16 %v256, %v252
  %v321 = vpack.c.b16 %v257, %v253
  %v322 = vpack.c.b16 %v262, %v258
  %v323 = vpack.c.b16 %v263, %v259
  %v324 = vpack.c.b16 %v264, %v260
  %v325 = vpack.c.b16 %v265, %v261
  %v326 = vpack.c.b16 %v270, %v266
  %v327 = vpack.c.b16 %v271, %v267
  %v328 = vpack.c.b16 %v272, %v268
  %v329 = vpack.c.b16 %v273, %v269
  %v330 = vpack.c.b16 %v278, %v274
  %v331 = vpack.c.b16 %v279, %v275
  %v332 = vpack.c.b16 %v280, %v276
  %v333 = vpack.c.b16 %v281, %v277
  %v334 = vpack.c.b16 %v282, %v282
  %v335 = vpack.c.b16 %v283, %v283
  %v336 = vpack.c.b16 %v284, %v284
  %v337 = vpack.c.b16 %v285, %v285
  %v454 = vunpack.c.l.b16 %v65
  %v455 = vunpack.c.l.b16 %v66
  %v456 = vunpack.c.l.b16 %v67
  %v457 = vunpack.c.l.b16 %v68
  %v458 = vunpack.c.l.b16 %v69
  %v459 = vunpack.c.l.b16 %v70
  %v460 = vunpack.c.l.b16 %v71
  %v461 = vunpack.c.l.b16 %v72
  %v462 = vunpack.c.l.b16 %v73
  %v463 = vunpack.c.l.b16 %v74
  %v464 = vunpack.c.l.b16 %v75
  %v465 = vunpack.c.l.b16 %v76
  %v466 = vunpack.c.l.b16 %v77
  %v467 = vunpack.c.l.b16 %v78
  %v468 = vunpack.c.l.b16 %v79
  %v469 = vunpack.c.l.b16 %v80
  %v470 = vunpack.c.l.b16 %v81
  %v471 = vunpack.c.l.b16 %v82
  %v472 = vunpack.c.l.b16 %v83
  %v473 = vunpack.c.l.b16 %v84
  %v474 = vunpack.c.l.b16 %v85
  %v475 = vunpack.c.l.b16 %v86
  %v476 = vunpack.c.l.b16 %v87
  %v477 = vunpack.c.l.b16 %v88
  %v478 = vunpack.c.l.b16 %v89
  %v479 = vunpack.c.l.b16 %v90
  %v480 = vunpack.c.l.b16 %v91
  %v481 = vunpack.c.l.b16 %v92
  %v482 = vunpack.c.l.b16 %v93
  %v483 = vunpack.c.l.b16 %v94
  %v484 = vunpack.c.l.b16 %v95
  %v485 = vunpack.c.l.b16 %v96
  %v486 = vunpack.c.l.b16 %v97
  %v487 = vunpack.c.l.b16 %v98
  %v488 = vunpack.c.l.b16 %v99
  %v489 = vunpack.c.l.b16 %v100
  %v490 = vunpack.c.l.b16 %v101
  %v491 = vunpack.c.l.b16 %v102
  %v492 = vunpack.c.l.b16 %v103
  %v493 = vunpack.c.l.b16 %v104
  %v494 = vunpack.c.l.b16 %v105
  %v495 = vunpack.c.l.b16 %v106
  %v496 = vunpack.c.l.b16 %v107
  %v497 = vunpack.c.l.b16 %v108
  %v498 = vunpack.c.l.b16 %v109
  %v499 = vunpack.c.l.b16 %v110
  %v500 = vunpack.c.l.b16 %v111
  %v501 = vunpack.c.l.b16 %v112
  %v502 = vunpack.c.l.b16 %v113
  %v503 = vunpack.c.l.b16 %v114
  %v504 = vunpack.c.l.b16 %v115
  %v505 = vunpack.c.l.b16 %v116
  %v506 = vunpack.c.l.b16 %v117
  %v507 = vunpack.c.l.b16 %v118
  %v508 = vunpack.c.l.b16 %v119
  %v509 = vunpack.c.l.b16 %v120
  %v510 = vunpack.c.l.b16 %v121
  %v511 = vunpack.c.l.b16 %v122
  %v512 = vunpack.c.l.b16 %v123
  %v513 = vunpack.c.l.b16 %v124
  %v514 = vunpack.c.l.b16 %v125
  %v515 = vunpack.c.l.b16 %v126
  %v516 = vunpack.c.l.b16 %v127
  %v517 = vunpack.c.l.b16 %v128
  %v518 = vpack.c.b16 %v455, %v454
  %v519 = vpack.c.b16 %v457, %v456
  %v520 = vpack.c.b16 %v459, %v458
  %v521 = vpack.c.b16 %v461, %v460
  %v522 = vpack.c.b16 %v463, %v462
  %v523 = vpack.c.b16 %v465, %v464
  %v524 = vpack.c.b16 %v467, %v466
  %v525 = vpack.c.b16 %v469, %v468
  %v526 = vpack.c.b16 %v471, %v470
  %v527 = vpack.c.b16 %v473, %v472
  %v528 = vpack.c.b16 %v475, %v474
  %v529 = vpack.c.b16 %v477, %v476
  %v530 = vpack.c.b16 %v479, %v478
  %v531 = vpack.c.b16 %v481, %v480
  %v532 = vpack.c.b16 %v483, %v482
  %v533 = vpack.c.b16 %v485, %v484
  %v534 = vpack.c.b16 %v487, %v486
  %v535 = vpack.c.b16 %v489, %v488
  %v536 = vpack.c.b16 %v491, %v490
  %v537 = vpack.c.b16 %v493, %v492
  %v538 = vpack.c.b16 %v495, %v494
  %v539 = vpack.c.b16 %v497, %v496
  %v540 = vpack.c.b16 %v499, %v498
  %v541 = vpack.c.b16 %v501, %v500
  %v542 = vpack.c.b16 %v503, %v502
  %v543 = vpack.c.b16 %v505, %v504
  %v544 = vpack.c.b16 %v507, %v506
  %v545 = vpack.c.b16 %v509, %v508
  %v546 = vpack.c.b16 %v511, %v510
  %v547 = vpack.c.b16 %v513, %v512
  %v548 = vpack.c.b16 %v515, %v514
  %v549 = vpack.c.b16 %v517, %v516
  %582 = vmatprep.subr.bf16.mxu0 0
  %583 = vmatpush1.bf16.msra.mxu0 %v518
  %584 = vmatprep.subr.bf16.mxu0 0
  %585 = vmatpush1.bf16.msra.mxu0 %v519
  %586 = vmatprep.subr.bf16.mxu0 0
  %587 = vmatpush1.bf16.msra.mxu0 %v520
  %588 = vmatprep.subr.bf16.mxu0 0
  %589 = vmatpush1.bf16.msra.mxu0 %v521
  %590 = vmatprep.subr.bf16.mxu0 0
  %591 = vmatpush1.bf16.msra.mxu0 %v522
  %592 = vmatprep.subr.bf16.mxu0 0
  %593 = vmatpush1.bf16.msra.mxu0 %v523
  %594 = vmatprep.subr.bf16.mxu0 0
  %595 = vmatpush1.bf16.msra.mxu0 %v524
  %596 = vmatprep.subr.bf16.mxu0 0
  %597 = vmatpush1.bf16.msra.mxu0 %v525
  %598 = vmatprep.subr.bf16.mxu0 0
  %599 = vmatpush1.bf16.msra.mxu0 %v526
  %600 = vmatprep.subr.bf16.mxu0 0
  %601 = vmatpush1.bf16.msra.mxu0 %v527
  %602 = vmatprep.subr.bf16.mxu0 0
  %603 = vmatpush1.bf16.msra.mxu0 %v528
  %604 = vmatprep.subr.bf16.mxu0 0
  %605 = vmatpush1.bf16.msra.mxu0 %v529
  %606 = vmatprep.subr.bf16.mxu0 0
  %607 = vmatpush1.bf16.msra.mxu0 %v530
  %608 = vmatprep.subr.bf16.mxu0 0
  %609 = vmatpush1.bf16.msra.mxu0 %v531
  %610 = vmatprep.subr.bf16.mxu0 0
  %611 = vmatpush1.bf16.msra.mxu0 %v532
  %612 = vmatprep.subr.bf16.mxu0 0
  %613 = vmatpush1.bf16.msra.mxu0 %v533
  %614 = vmatprep.mubr.bf16.mxu0 %v287
  %615 = vmatmul.mubr.bf16.gmra.mrb[0].mxu0 %v286
  %v616 = vpop.f32.mrb[0].mxu0
  %v617 = vadd.f32 %v134, %v616
  %v618 = vpop.f32.mrb[0].mxu0
  %v619 = vpop.f32.mrb[0].mxu0
  %v620 = vadd.f32 %v134, %v619
  %v621 = vpop.f32.mrb[0].mxu0
  %622 = vmatprep.mubr.bf16.mxu0 %v291
  %623 = vmatmul.mubr.bf16.gmra.mrb[0].mxu0 %v290
  %v624 = vpop.f32.mrb[0].mxu0
  %v625 = vadd.f32 %v134, %v624
  %v626 = vpop.f32.mrb[0].mxu0
  %v627 = vpop.f32.mrb[0].mxu0
  %v628 = vadd.f32 %v134, %v627
  %v629 = vpop.f32.mrb[0].mxu0
  %630 = vmatprep.mubr.bf16.mxu0 %v295
  %631 = vmatmul.mubr.bf16.gmra.mrb[0].mxu0 %v294
  %v632 = vpop.f32.mrb[0].mxu0
  %v633 = vadd.f32 %v134, %v632
  %v634 = vpop.f32.mrb[0].mxu0
  %v635 = vpop.f32.mrb[0].mxu0
  %v636 = vadd.f32 %v134, %v635
  %v637 = vpop.f32.mrb[0].mxu0
  %638 = vmatprep.mubr.bf16.mxu0 %v299
  %639 = vmatmul.mubr.bf16.gmra.mrb[0].mxu0 %v298
  %v640 = vpop.f32.mrb[0].mxu0
  %v641 = vadd.f32 %v134, %v640
  %v642 = vpop.f32.mrb[0].mxu0
  %v643 = vpop.f32.mrb[0].mxu0
  %v644 = vadd.f32 %v134, %v643
  %v645 = vpop.f32.mrb[0].mxu0
  %646 = vmatprep.mubr.bf16.mxu0 %v303
  %647 = vmatmul.mubr.bf16.gmra.mrb[0].mxu0 %v302
  %v648 = vpop.f32.mrb[0].mxu0
  %v649 = vadd.f32 %v134, %v648
  %v650 = vpop.f32.mrb[0].mxu0
  %v651 = vpop.f32.mrb[0].mxu0
  %v652 = vadd.f32 %v134, %v651
  %v653 = vpop.f32.mrb[0].mxu0
  %654 = vmatprep.mubr.bf16.mxu0 %v307
  %655 = vmatmul.mubr.bf16.gmra.mrb[0].mxu0 %v306
  %v656 = vpop.f32.mrb[0].mxu0
  %v657 = vadd.f32 %v134, %v656
  %v658 = vpop.f32.mrb[0].mxu0
  %v659 = vpop.f32.mrb[0].mxu0
  %v660 = vadd.f32 %v134, %v659
  %v661 = vpop.f32.mrb[0].mxu0
  %662 = vmatprep.mubr.bf16.mxu0 %v311
  %663 = vmatmul.mubr.bf16.gmra.mrb[0].mxu0 %v310
  %v664 = vpop.f32.mrb[0].mxu0
  %v665 = vadd.f32 %v134, %v664
  %v666 = vpop.f32.mrb[0].mxu0
  %v667 = vpop.f32.mrb[0].mxu0
  %v668 = vadd.f32 %v134, %v667
  %v669 = vpop.f32.mrb[0].mxu0
  %670 = vmatprep.mubr.bf16.mxu0 %v315
  %671 = vmatmul.mubr.bf16.gmra.mrb[0].mxu0 %v314
  %v672 = vpop.f32.mrb[0].mxu0
  %v673 = vadd.f32 %v134, %v672
  %v674 = vpop.f32.mrb[0].mxu0
  %v675 = vpop.f32.mrb[0].mxu0
  %v676 = vadd.f32 %v134, %v675
  %v677 = vpop.f32.mrb[0].mxu0
  %678 = vmatprep.mubr.bf16.mxu0 %v319
  %679 = vmatmul.mubr.bf16.gmra.mrb[0].mxu0 %v318
  %v680 = vpop.f32.mrb[0].mxu0
  %v681 = vadd.f32 %v134, %v680
  %v682 = vpop.f32.mrb[0].mxu0
  %v683 = vpop.f32.mrb[0].mxu0
  %v684 = vadd.f32 %v134, %v683
  %v685 = vpop.f32.mrb[0].mxu0
  %686 = vmatprep.mubr.bf16.mxu0 %v323
  %687 = vmatmul.mubr.bf16.gmra.mrb[0].mxu0 %v322
  %v688 = vpop.f32.mrb[0].mxu0
  %v689 = vadd.f32 %v134, %v688
  %v690 = vpop.f32.mrb[0].mxu0
  %v691 = vpop.f32.mrb[0].mxu0
  %v692 = vadd.f32 %v134, %v691
  %v693 = vpop.f32.mrb[0].mxu0
  %694 = vmatprep.mubr.bf16.mxu0 %v327
  %695 = vmatmul.mubr.bf16.gmra.mrb[0].mxu0 %v326
  %v696 = vpop.f32.mrb[0].mxu0
  %v697 = vadd.f32 %v134, %v696
  %v698 = vpop.f32.mrb[0].mxu0
  %v699 = vpop.f32.mrb[0].mxu0
  %v700 = vadd.f32 %v134, %v699
  %v701 = vpop.f32.mrb[0].mxu0
  %702 = vmatprep.mubr.bf16.mxu0 %v331
  %703 = vmatmul.mubr.bf16.gmra.mrb[0].mxu0 %v330
  %v704 = vpop.f32.mrb[0].mxu0
  %v705 = vadd.f32 %v134, %v704
  %v706 = vpop.f32.mrb[0].mxu0
  %v707 = vpop.f32.mrb[0].mxu0
  %v708 = vadd.f32 %v134, %v707
  %v709 = vpop.f32.mrb[0].mxu0
  %710 = vmatprep.mubr.bf16.mxu0 %v335
  %711 = vmatmul.mubr.bf16.gmra.mrb[0].mxu0 %v334
  %v712 = vpop.f32.mrb[0].mxu0
  %v713 = vadd.f32 %v134, %v712
  %v714 = vpop.f32.mrb[0].mxu0
  %v715 = vpop.f32.mrb[0].mxu0
  %v716 = vpop.f32.mrb[0].mxu0
  %717 = vdwg.mxu0
  %718 = vmatprep.subr.bf16.mxu0 0
  %719 = vmatpush1.bf16.msra.mxu0 %v534
  %720 = vmatprep.subr.bf16.mxu0 0
  %721 = vmatpush1.bf16.msra.mxu0 %v535
  %722 = vmatprep.subr.bf16.mxu0 0
  %723 = vmatpush1.bf16.msra.mxu0 %v536
  %724 = vmatprep.subr.bf16.mxu0 0
  %725 = vmatpush1.bf16.msra.mxu0 %v537
  %726 = vmatprep.subr.bf16.mxu0 0
  %727 = vmatpush1.bf16.msra.mxu0 %v538
  %728 = vmatprep.subr.bf16.mxu0 0
  %729 = vmatpush1.bf16.msra.mxu0 %v539
  %730 = vmatprep.subr.bf16.mxu0 0
  %731 = vmatpush1.bf16.msra.mxu0 %v540
  %732 = vmatprep.subr.bf16.mxu0 0
  %733 = vmatpush1.bf16.msra.mxu0 %v541
  %734 = vmatprep.subr.bf16.mxu0 0
  %735 = vmatpush1.bf16.msra.mxu0 %v542
  %736 = vmatprep.subr.bf16.mxu0 0
  %737 = vmatpush1.bf16.msra.mxu0 %v543
  %738 = vmatprep.subr.bf16.mxu0 0
  %739 = vmatpush1.bf16.msra.mxu0 %v544
  %740 = vmatprep.subr.bf16.mxu0 0
  %741 = vmatpush1.bf16.msra.mxu0 %v545
  %742 = vmatprep.subr.bf16.mxu0 0
  %743 = vmatpush1.bf16.msra.mxu0 %v546
  %744 = vmatprep.subr.bf16.mxu0 0
  %745 = vmatpush1.bf16.msra.mxu0 %v547
  %746 = vmatprep.subr.bf16.mxu0 0
  %747 = vmatpush1.bf16.msra.mxu0 %v548
  %748 = vmatprep.subr.bf16.mxu0 0
  %749 = vmatpush1.bf16.msra.mxu0 %v549
  %750 = vmatprep.mubr.bf16.mxu0 %v289
  %751 = vmatmul.mubr.bf16.gmra.mrb[0].mxu0 %v288
  %v752 = vpop.f32.mrb[0].mxu0
  %v753 = vadd.f32 %v617, %v752
  %v754 = vpop.f32.mrb[0].mxu0
  %v755 = vpop.f32.mrb[0].mxu0
  %v756 = vadd.f32 %v620, %v755
  %v757 = vpop.f32.mrb[0].mxu0
  %758 = vmatprep.mubr.bf16.mxu0 %v293
  %759 = vmatmul.mubr.bf16.gmra.mrb[0].mxu0 %v292
  %v760 = vpop.f32.mrb[0].mxu0
  %v761 = vadd.f32 %v625, %v760
  %v762 = vpop.f32.mrb[0].mxu0
  %v763 = vpop.f32.mrb[0].mxu0
  %v764 = vadd.f32 %v628, %v763
  %v765 = vpop.f32.mrb[0].mxu0
  %766 = vmatprep.mubr.bf16.mxu0 %v297
  %767 = vmatmul.mubr.bf16.gmra.mrb[0].mxu0 %v296
  %v768 = vpop.f32.mrb[0].mxu0
  %v769 = vadd.f32 %v633, %v768
  %v770 = vpop.f32.mrb[0].mxu0
  %v771 = vpop.f32.mrb[0].mxu0
  %v772 = vadd.f32 %v636, %v771
  %v773 = vpop.f32.mrb[0].mxu0
  %774 = vmatprep.mubr.bf16.mxu0 %v301
  %775 = vmatmul.mubr.bf16.gmra.mrb[0].mxu0 %v300
  %v776 = vpop.f32.mrb[0].mxu0
  %v777 = vadd.f32 %v641, %v776
  %v778 = vpop.f32.mrb[0].mxu0
  %v779 = vpop.f32.mrb[0].mxu0
  %v780 = vadd.f32 %v644, %v779
  %v781 = vpop.f32.mrb[0].mxu0
  %782 = vmatprep.mubr.bf16.mxu0 %v305
  %783 = vmatmul.mubr.bf16.gmra.mrb[0].mxu0 %v304
  %v784 = vpop.f32.mrb[0].mxu0
  %v785 = vadd.f32 %v649, %v784
  %v786 = vpop.f32.mrb[0].mxu0
  %v787 = vpop.f32.mrb[0].mxu0
  %v788 = vadd.f32 %v652, %v787
  %v789 = vpop.f32.mrb[0].mxu0
  %790 = vmatprep.mubr.bf16.mxu0 %v309
  %791 = vmatmul.mubr.bf16.gmra.mrb[0].mxu0 %v308
  %v792 = vpop.f32.mrb[0].mxu0
  %v793 = vadd.f32 %v657, %v792
  %v794 = vpop.f32.mrb[0].mxu0
  %v795 = vpop.f32.mrb[0].mxu0
  %v796 = vadd.f32 %v660, %v795
  %v797 = vpop.f32.mrb[0].mxu0
  %798 = vmatprep.mubr.bf16.mxu0 %v313
  %799 = vmatmul.mubr.bf16.gmra.mrb[0].mxu0 %v312
  %v800 = vpop.f32.mrb[0].mxu0
  %v801 = vadd.f32 %v665, %v800
  %v802 = vpop.f32.mrb[0].mxu0
  %v803 = vpop.f32.mrb[0].mxu0
  %v804 = vadd.f32 %v668, %v803
  %v805 = vpop.f32.mrb[0].mxu0
  %806 = vmatprep.mubr.bf16.mxu0 %v317
  %807 = vmatmul.mubr.bf16.gmra.mrb[0].mxu0 %v316
  %v808 = vpop.f32.mrb[0].mxu0
  %v809 = vadd.f32 %v673, %v808
  %v810 = vpop.f32.mrb[0].mxu0
  %v811 = vpop.f32.mrb[0].mxu0
  %v812 = vadd.f32 %v676, %v811
  %v813 = vpop.f32.mrb[0].mxu0
  %814 = vmatprep.mubr.bf16.mxu0 %v321
  %815 = vmatmul.mubr.bf16.gmra.mrb[0].mxu0 %v320
  %v816 = vpop.f32.mrb[0].mxu0
  %v817 = vadd.f32 %v681, %v816
  %v818 = vpop.f32.mrb[0].mxu0
  %v819 = vpop.f32.mrb[0].mxu0
  %v820 = vadd.f32 %v684, %v819
  %v821 = vpop.f32.mrb[0].mxu0
  %822 = vmatprep.mubr.bf16.mxu0 %v325
  %823 = vmatmul.mubr.bf16.gmra.mrb[0].mxu0 %v324
  %v824 = vpop.f32.mrb[0].mxu0
  %v825 = vadd.f32 %v689, %v824
  %v826 = vpop.f32.mrb[0].mxu0
  %v827 = vpop.f32.mrb[0].mxu0
  %v828 = vadd.f32 %v692, %v827
  %v829 = vpop.f32.mrb[0].mxu0
  %830 = vmatprep.mubr.bf16.mxu0 %v329
  %831 = vmatmul.mubr.bf16.gmra.mrb[0].mxu0 %v328
  %v832 = vpop.f32.mrb[0].mxu0
  %v833 = vadd.f32 %v697, %v832
  %v834 = vpop.f32.mrb[0].mxu0
  %v835 = vpop.f32.mrb[0].mxu0
  %v836 = vadd.f32 %v700, %v835
  %v837 = vpop.f32.mrb[0].mxu0
  %838 = vmatprep.mubr.bf16.mxu0 %v333
  %839 = vmatmul.mubr.bf16.gmra.mrb[0].mxu0 %v332
  %v840 = vpop.f32.mrb[0].mxu0
  %v841 = vadd.f32 %v705, %v840
  %v842 = vpop.f32.mrb[0].mxu0
  %v843 = vpop.f32.mrb[0].mxu0
  %v844 = vadd.f32 %v708, %v843
  %v845 = vpop.f32.mrb[0].mxu0
  %846 = vmatprep.mubr.bf16.mxu0 %v337
  %847 = vmatmul.mubr.bf16.gmra.mrb[0].mxu0 %v336
  %v848 = vpop.f32.mrb[0].mxu0
  %v849 = vadd.f32 %v713, %v848
  %v850 = vpop.f32.mrb[0].mxu0
  %v851 = vpop.f32.mrb[0].mxu0
  %v852 = vpop.f32.mrb[0].mxu0
  %853 = vdwg.mxu0
  %v854 = vmax.f32 %v753, 0.0
  %v855 = vmax.f32 %v756, 0.0
  %v856 = vmax.f32 %v761, 0.0
  %v857 = vmax.f32 %v764, 0.0
  %v858 = vmax.f32 %v769, 0.0
  %v859 = vmax.f32 %v772, 0.0
  %v860 = vmax.f32 %v777, 0.0
  %v861 = vmax.f32 %v780, 0.0
  %v862 = vmax.f32 %v785, 0.0
  %v863 = vmax.f32 %v788, 0.0
  %v864 = vmax.f32 %v793, 0.0
  %v865 = vmax.f32 %v796, 0.0
  %v866 = vmax.f32 %v801, 0.0
  %v867 = vmax.f32 %v804, 0.0
  %v868 = vmax.f32 %v809, 0.0
  %v869 = vmax.f32 %v812, 0.0
  %v870 = vmax.f32 %v817, 0.0
  %v871 = vmax.f32 %v820, 0.0
  %v872 = vmax.f32 %v825, 0.0
  %v873 = vmax.f32 %v828, 0.0
  %v874 = vmax.f32 %v833, 0.0
  %v875 = vmax.f32 %v836, 0.0
  %v876 = vmax.f32 %v841, 0.0
  %v877 = vmax.f32 %v844, 0.0
  %v878 = vmax.f32 %v849, 0.0
  %v879 = vpack.c.bf16 %v855, %v854
  %v880 = vpack.c.bf16 %v857, %v856
  %v881 = vpack.c.bf16 %v859, %v858
  %v882 = vpack.c.bf16 %v861, %v860
  %v883 = vpack.c.bf16 %v863, %v862
  %v884 = vpack.c.bf16 %v865, %v864
  %v885 = vpack.c.bf16 %v867, %v866
  %v886 = vpack.c.bf16 %v869, %v868
  %v887 = vpack.c.bf16 %v871, %v870
  %v888 = vpack.c.bf16 %v873, %v872
  %v889 = vpack.c.bf16 %v875, %v874
  %v890 = vpack.c.bf16 %v877, %v876
  %v891 = vpack.c.bf16 %v878, %v878
  %v905 = vunpack.c.l.b16 %v879
  %v906 = vunpack.c.h.b16 %v879
  %v907 = vunpack.c.l.b16 %v880
  %v908 = vunpack.c.h.b16 %v880
  %v909 = vunpack.c.l.b16 %v881
  %v910 = vunpack.c.h.b16 %v881
  %v911 = vunpack.c.l.b16 %v882
  %v912 = vunpack.c.h.b16 %v882
  %v913 = vunpack.c.l.b16 %v883
  %v914 = vunpack.c.h.b16 %v883
  %v915 = vunpack.c.l.b16 %v884
  %v916 = vunpack.c.h.b16 %v884
  %v917 = vunpack.c.l.b16 %v885
  %v918 = vunpack.c.h.b16 %v885
  %v919 = vunpack.c.l.b16 %v886
  %v920 = vunpack.c.h.b16 %v886
  %v921 = vunpack.c.l.b16 %v887
  %v922 = vunpack.c.h.b16 %v887
  %v923 = vunpack.c.l.b16 %v888
  %v924 = vunpack.c.h.b16 %v888
  %v925 = vunpack.c.l.b16 %v889
  %v926 = vunpack.c.h.b16 %v889
  %v927 = vunpack.c.l.b16 %v890
  %v928 = vunpack.c.h.b16 %v890
  %v929 = vunpack.c.l.b16 %v891
  %v930 = vpack.c.b16 %v905, %v905
  %v931 = vpack.c.b16 %v906, %v906
  %v932 = vpack.c.b16 %v907, %v907
  %v933 = vpack.c.b16 %v908, %v908
  %v934 = vpack.c.b16 %v909, %v909
  %v935 = vpack.c.b16 %v910, %v910
  %v936 = vpack.c.b16 %v911, %v911
  %v937 = vpack.c.b16 %v912, %v912
  %v938 = vpack.c.b16 %v913, %v913
  %v939 = vpack.c.b16 %v914, %v914
  %v940 = vpack.c.b16 %v915, %v915
  %v941 = vpack.c.b16 %v916, %v916
  %v942 = vpack.c.b16 %v917, %v917
  %v943 = vpack.c.b16 %v918, %v918
  %v944 = vpack.c.b16 %v919, %v919
  %v945 = vpack.c.b16 %v920, %v920
  %v946 = vpack.c.b16 %v921, %v921
  %v947 = vpack.c.b16 %v922, %v922
  %v948 = vpack.c.b16 %v923, %v923
  %v949 = vpack.c.b16 %v924, %v924
  %v950 = vpack.c.b16 %v925, %v925
  %v951 = vpack.c.b16 %v926, %v926
  %v952 = vpack.c.b16 %v927, %v927
  %v953 = vpack.c.b16 %v928, %v928
  %v954 = vpack.c.b16 %v929, %v929
  %980 = vst [vmem:[%s3] sm:$0xf] %v930
  %981 = vst [vmem:[%s3 + $0x4] sm:$0xf] %v931
  %982 = vst [vmem:[%s3 + $0x8] sm:$0xf] %v932
  %983 = vst [vmem:[%s3 + $0xc] sm:$0xf] %v933
  %984 = vst [vmem:[%s3 + $0x10] sm:$0xf] %v934
  %985 = vst [vmem:[%s3 + $0x14] sm:$0xf] %v935
  %986 = vst [vmem:[%s3 + $0x18] sm:$0xf] %v936
  %987 = vst [vmem:[%s3 + $0x1c] sm:$0xf] %v937
  %988 = vst [vmem:[%s3 + $0x20] sm:$0xf] %v938
  %989 = vst [vmem:[%s3 + $0x24] sm:$0xf] %v939
  %990 = vst [vmem:[%s3 + $0x28] sm:$0xf] %v940
  %991 = vst [vmem:[%s3 + $0x2c] sm:$0xf] %v941
  %992 = vst [vmem:[%s3 + $0x30] sm:$0xf] %v942
  %993 = vst [vmem:[%s3 + $0x34] sm:$0xf] %v943
  %994 = vst [vmem:[%s3 + $0x38] sm:$0xf] %v944
  %995 = vst [vmem:[%s3 + $0x3c] sm:$0xf] %v945
  %996 = vst [vmem:[%s3 + $0x40] sm:$0xf] %v946
  %997 = vst [vmem:[%s3 + $0x44] sm:$0xf] %v947
  %998 = vst [vmem:[%s3 + $0x48] sm:$0xf] %v948
  %999 = vst [vmem:[%s3 + $0x4c] sm:$0xf] %v949
  %1000 = vst [vmem:[%s3 + $0x50] sm:$0xf] %v950
  %1001 = vst [vmem:[%s3 + $0x54] sm:$0xf] %v951
  %1002 = vst [vmem:[%s3 + $0x58] sm:$0xf] %v952
  %1003 = vst [vmem:[%s3 + $0x5c] sm:$0xf] %v953
  %1004 = vst [vmem:[%s3 + $0x60] sm:$0xf] %v954
  // Predicated region
  $region14: #{mixer_forward.4} parent=0 // pred_check
    _
  $region15: #{mixer_forward.4} parent=0 // pred_check_branch
    %1006 = sbr.rel (0) target = $region17
  $region16: #{mixer_forward.4} parent=0 // pred_region
    _
  $region17: #{mixer_forward.4} parent=0 // pred_fallthru
    _
  // Predicated region
  $region18: #{mixer_forward.4} parent=0 // pred_check
    _
  $region19: #{mixer_forward.4} parent=0 // pred_check_branch
    %1008 = sbr.rel (0) target = $region21
  $region20: #{mixer_forward.4} parent=0 // pred_region
    _
  $region21: #{mixer_forward.4} parent=0 // pred_fallthru
    _

// kernel: mixer_forward.5
$region0: #{mixer_forward.5}
  #allocation0 [shape = 'u32[]', space=smem, size = 0x4, offset = 0x4, fixed_abs, tag = 'smem constant byte address 0x4 - core index']
  #allocation1 [shape = 'u32[144,128]{1,0:T(1,128)}', space=vmem, size = 0x12000, scoped, tag = 'internal scratch']
  %s0 = inlined_call_operand.vmem [shape: bf16[8,512], index: 0, kind: input, shape index: {}]
  %s1 = inlined_call_operand.vmem [shape: bf16[512,128], index: 1, kind: input, shape index: {}]
  %s2 = inlined_call_operand.vmem [shape: f32[1,128], index: 2, kind: input, shape index: {}]
  %s3 = inlined_call_operand.vmem [shape: bf16[8,128], index: 3, kind: output, shape index: {}]
  %s4 = sld [smem:[#allocation0]]
  $region22: #{mixer_forward.5} parent=0
    _
  %s6 = ssub.s32 1, %s4
  %s7 = scalar_select 0, %s6, %s4
  // Predicated region
  $region2: #{mixer_forward.5} parent=0 // pred_check
    _
  $region3: #{mixer_forward.5} parent=0 // pred_check_branch
    %9 = sbr.rel (0) target = $region5
  $region4: #{mixer_forward.5} parent=0 // pred_region
    _
  $region5: #{mixer_forward.5} parent=0 // pred_fallthru
    _
  // Predicated region
  $region6: #{mixer_forward.5} parent=0 // pred_check
    _
  $region7: #{mixer_forward.5} parent=0 // pred_check_branch
    %11 = sbr.rel (0) target = $region9
  $region8: #{mixer_forward.5} parent=0 // pred_region
    _
  $region9: #{mixer_forward.5} parent=0 // pred_fallthru
    _
  // Predicated region
  $region10: #{mixer_forward.5} parent=0 // pred_check
    _
  $region11: #{mixer_forward.5} parent=0 // pred_check_branch
    %13 = sbr.rel (0) target = $region13
  $region12: #{mixer_forward.5} parent=0 // pred_region
    _
  $region13: #{mixer_forward.5} parent=0 // pred_fallthru
    _
  %v15 = vld [vmem:[%s0] sm:$0xff]
  %v16 = vld [vmem:[%s0 + $0x8] sm:$0xff]
  %v17 = vld [vmem:[%s1] sm:$0xf]
  %v18 = vld [vmem:[%s1 + $0x4] sm:$0xf]
  %v19 = vld [vmem:[%s1 + $0x8] sm:$0xf]
  %v20 = vld [vmem:[%s1 + $0xc] sm:$0xf]
  %v21 = vld [vmem:[%s1 + $0x10] sm:$0xf]
  %v22 = vld [vmem:[%s1 + $0x14] sm:$0xf]
  %v23 = vld [vmem:[%s1 + $0x18] sm:$0xf]
  %v24 = vld [vmem:[%s1 + $0x1c] sm:$0xf]
  %v25 = vld [vmem:[%s1 + $0x20] sm:$0xf]
  %v26 = vld [vmem:[%s1 + $0x24] sm:$0xf]
  %v27 = vld [vmem:[%s1 + $0x28] sm:$0xf]
  %v28 = vld [vmem:[%s1 + $0x2c] sm:$0xf]
  %v29 = vld [vmem:[%s1 + $0x30] sm:$0xf]
  %v30 = vld [vmem:[%s1 + $0x34] sm:$0xf]
  %v31 = vld [vmem:[%s1 + $0x38] sm:$0xf]
  %v32 = vld [vmem:[%s1 + $0x3c] sm:$0xf]
  %v33 = vld [vmem:[%s1 + $0x40] sm:$0xf]
  %v34 = vld [vmem:[%s1 + $0x44] sm:$0xf]
  %v35 = vld [vmem:[%s1 + $0x48] sm:$0xf]
  %v36 = vld [vmem:[%s1 + $0x4c] sm:$0xf]
  %v37 = vld [vmem:[%s1 + $0x50] sm:$0xf]
  %v38 = vld [vmem:[%s1 + $0x54] sm:$0xf]
  %v39 = vld [vmem:[%s1 + $0x58] sm:$0xf]
  %v40 = vld [vmem:[%s1 + $0x5c] sm:$0xf]
  %v41 = vld [vmem:[%s1 + $0x60] sm:$0xf]
  %v42 = vld [vmem:[%s1 + $0x64] sm:$0xf]
  %v43 = vld [vmem:[%s1 + $0x68] sm:$0xf]
  %v44 = vld [vmem:[%s1 + $0x6c] sm:$0xf]
  %v45 = vld [vmem:[%s1 + $0x70] sm:$0xf]
  %v46 = vld [vmem:[%s1 + $0x74] sm:$0xf]
  %v47 = vld [vmem:[%s1 + $0x78] sm:$0xf]
  %v48 = vld [vmem:[%s1 + $0x7c] sm:$0xf]
  %v49 = vld [vmem:[%s1 + $0x80] sm:$0xf]
  %v50 = vld [vmem:[%s1 + $0x84] sm:$0xf]
  %v51 = vld [vmem:[%s1 + $0x88] sm:$0xf]
  %v52 = vld [vmem:[%s1 + $0x8c] sm:$0xf]
  %v53 = vld [vmem:[%s1 + $0x90] sm:$0xf]
  %v54 = vld [vmem:[%s1 + $0x94] sm:$0xf]
  %v55 = vld [vmem:[%s1 + $0x98] sm:$0xf]
  %v56 = vld [vmem:[%s1 + $0x9c] sm:$0xf]
  %v57 = vld [vmem:[%s1 + $0xa0] sm:$0xf]
  %v58 = vld [vmem:[%s1 + $0xa4] sm:$0xf]
  %v59 = vld [vmem:[%s1 + $0xa8] sm:$0xf]
  %v60 = vld [vmem:[%s1 + $0xac] sm:$0xf]
  %v61 = vld [vmem:[%s1 + $0xb0] sm:$0xf]
  %v62 = vld [vmem:[%s1 + $0xb4] sm:$0xf]
  %v63 = vld [vmem:[%s1 + $0xb8] sm:$0xf]
  %v64 = vld [vmem:[%s1 + $0xbc] sm:$0xf]
  %v65 = vld [vmem:[%s1 + $0xc0] sm:$0xf]
  %v66 = vld [vmem:[%s1 + $0xc4] sm:$0xf]
  %v67 = vld [vmem:[%s1 + $0xc8] sm:$0xf]
  %v68 = vld [vmem:[%s1 + $0xcc] sm:$0xf]
  %v69 = vld [vmem:[%s1 + $0xd0] sm:$0xf]
  %v70 = vld [vmem:[%s1 + $0xd4] sm:$0xf]
  %v71 = vld [vmem:[%s1 + $0xd8] sm:$0xf]
  %v72 = vld [vmem:[%s1 + $0xdc] sm:$0xf]
  %v73 = vld [vmem:[%s1 + $0xe0] sm:$0xf]
  %v74 = vld [vmem:[%s1 + $0xe4] sm:$0xf]
  %v75 = vld [vmem:[%s1 + $0xe8] sm:$0xf]
  %v76 = vld [vmem:[%s1 + $0xec] sm:$0xf]
  %v77 = vld [vmem:[%s1 + $0xf0] sm:$0xf]
  %v78 = vld [vmem:[%s1 + $0xf4] sm:$0xf]
  %v79 = vld [vmem:[%s1 + $0xf8] sm:$0xf]
  %v80 = vld [vmem:[%s1 + $0xfc] sm:$0xf]
  %v81 = vld [vmem:[%s2] sm:$0x1]
  %v83 = vlaneseq
  %v84 = vshrl.u32 %v83, 7
  %v85 = vsub.s32 0, %v84
  %v86 = vrot.slane %v81, %v85
  %v90 = vunpack.c.l.b16 %v15
  %v91 = vunpack.c.h.b16 %v15
  %v92 = vunpack.c.l.b16 %v16
  %v93 = vunpack.c.h.b16 %v16
  %v94 = vpack.c.b16 %v90, %v90
  %v95 = vpack.c.b16 %v91, %v91
  %v96 = vpack.c.b16 %v92, %v92
  %v97 = vpack.c.b16 %v93, %v93
  %v166 = vunpack.c.l.b16 %v17
  %v167 = vunpack.c.l.b16 %v18
  %v168 = vunpack.c.l.b16 %v19
  %v169 = vunpack.c.l.b16 %v20
  %v170 = vunpack.c.l.b16 %v21
  %v171 = vunpack.c.l.b16 %v22
  %v172 = vunpack.c.l.b16 %v23
  %v173 = vunpack.c.l.b16 %v24
  %v174 = vunpack.c.l.b16 %v25
  %v175 = vunpack.c.l.b16 %v26
  %v176 = vunpack.c.l.b16 %v27
  %v177 = vunpack.c.l.b16 %v28
  %v178 = vunpack.c.l.b16 %v29
  %v179 = vunpack.c.l.b16 %v30
  %v180 = vunpack.c.l.b16 %v31
  %v181 = vunpack.c.l.b16 %v32
  %v182 = vunpack.c.l.b16 %v33
  %v183 = vunpack.c.l.b16 %v34
  %v184 = vunpack.c.l.b16 %v35
  %v185 = vunpack.c.l.b16 %v36
  %v186 = vunpack.c.l.b16 %v37
  %v187 = vunpack.c.l.b16 %v38
  %v188 = vunpack.c.l.b16 %v39
  %v189 = vunpack.c.l.b16 %v40
  %v190 = vunpack.c.l.b16 %v41
  %v191 = vunpack.c.l.b16 %v42
  %v192 = vunpack.c.l.b16 %v43
  %v193 = vunpack.c.l.b16 %v44
  %v194 = vunpack.c.l.b16 %v45
  %v195 = vunpack.c.l.b16 %v46
  %v196 = vunpack.c.l.b16 %v47
  %v197 = vunpack.c.l.b16 %v48
  %v198 = vunpack.c.l.b16 %v49
  %v199 = vunpack.c.l.b16 %v50
  %v200 = vunpack.c.l.b16 %v51
  %v201 = vunpack.c.l.b16 %v52
  %v202 = vunpack.c.l.b16 %v53
  %v203 = vunpack.c.l.b16 %v54
  %v204 = vunpack.c.l.b16 %v55
  %v205 = vunpack.c.l.b16 %v56
  %v206 = vunpack.c.l.b16 %v57
  %v207 = vunpack.c.l.b16 %v58
  %v208 = vunpack.c.l.b16 %v59
  %v209 = vunpack.c.l.b16 %v60
  %v210 = vunpack.c.l.b16 %v61
  %v211 = vunpack.c.l.b16 %v62
  %v212 = vunpack.c.l.b16 %v63
  %v213 = vunpack.c.l.b16 %v64
  %v214 = vunpack.c.l.b16 %v65
  %v215 = vunpack.c.l.b16 %v66
  %v216 = vunpack.c.l.b16 %v67
  %v217 = vunpack.c.l.b16 %v68
  %v218 = vunpack.c.l.b16 %v69
  %v219 = vunpack.c.l.b16 %v70
  %v220 = vunpack.c.l.b16 %v71
  %v221 = vunpack.c.l.b16 %v72
  %v222 = vunpack.c.l.b16 %v73
  %v223 = vunpack.c.l.b16 %v74
  %v224 = vunpack.c.l.b16 %v75
  %v225 = vunpack.c.l.b16 %v76
  %v226 = vunpack.c.l.b16 %v77
  %v227 = vunpack.c.l.b16 %v78
  %v228 = vunpack.c.l.b16 %v79
  %v229 = vunpack.c.l.b16 %v80
  %v230 = vpack.c.b16 %v167, %v166
  %v231 = vpack.c.b16 %v169, %v168
  %v232 = vpack.c.b16 %v171, %v170
  %v233 = vpack.c.b16 %v173, %v172
  %v234 = vpack.c.b16 %v175, %v174
  %v235 = vpack.c.b16 %v177, %v176
  %v236 = vpack.c.b16 %v179, %v178
  %v237 = vpack.c.b16 %v181, %v180
  %v238 = vpack.c.b16 %v183, %v182
  %v239 = vpack.c.b16 %v185, %v184
  %v240 = vpack.c.b16 %v187, %v186
  %v241 = vpack.c.b16 %v189, %v188
  %v242 = vpack.c.b16 %v191, %v190
  %v243 = vpack.c.b16 %v193, %v192
  %v244 = vpack.c.b16 %v195, %v194
  %v245 = vpack.c.b16 %v197, %v196
  %v246 = vpack.c.b16 %v199, %v198
  %v247 = vpack.c.b16 %v201, %v200
  %v248 = vpack.c.b16 %v203, %v202
  %v249 = vpack.c.b16 %v205, %v204
  %v250 = vpack.c.b16 %v207, %v206
  %v251 = vpack.c.b16 %v209, %v208
  %v252 = vpack.c.b16 %v211, %v210
  %v253 = vpack.c.b16 %v213, %v212
  %v254 = vpack.c.b16 %v215, %v214
  %v255 = vpack.c.b16 %v217, %v216
  %v256 = vpack.c.b16 %v219, %v218
  %v257 = vpack.c.b16 %v221, %v220
  %v258 = vpack.c.b16 %v223, %v222
  %v259 = vpack.c.b16 %v225, %v224
  %v260 = vpack.c.b16 %v227, %v226
  %v261 = vpack.c.b16 %v229, %v228
  %294 = vmatprep.subr.bf16.mxu0 0
  %295 = vmatpush1.bf16.msra.mxu0 %v230
  %296 = vmatprep.subr.bf16.mxu0 0
  %297 = vmatpush1.bf16.msra.mxu0 %v231
  %298 = vmatprep.subr.bf16.mxu0 0
  %299 = vmatpush1.bf16.msra.mxu0 %v232
  %300 = vmatprep.subr.bf16.mxu0 0
  %301 = vmatpush1.bf16.msra.mxu0 %v233
  %302 = vmatprep.subr.bf16.mxu0 0
  %303 = vmatpush1.bf16.msra.mxu0 %v234
  %304 = vmatprep.subr.bf16.mxu0 0
  %305 = vmatpush1.bf16.msra.mxu0 %v235
  %306 = vmatprep.subr.bf16.mxu0 0
  %307 = vmatpush1.bf16.msra.mxu0 %v236
  %308 = vmatprep.subr.bf16.mxu0 0
  %309 = vmatpush1.bf16.msra.mxu0 %v237
  %310 = vmatprep.subr.bf16.mxu0 0
  %311 = vmatpush1.bf16.msra.mxu0 %v238
  %312 = vmatprep.subr.bf16.mxu0 0
  %313 = vmatpush1.bf16.msra.mxu0 %v239
  %314 = vmatprep.subr.bf16.mxu0 0
  %315 = vmatpush1.bf16.msra.mxu0 %v240
  %316 = vmatprep.subr.bf16.mxu0 0
  %317 = vmatpush1.bf16.msra.mxu0 %v241
  %318 = vmatprep.subr.bf16.mxu0 0
  %319 = vmatpush1.bf16.msra.mxu0 %v242
  %320 = vmatprep.subr.bf16.mxu0 0
  %321 = vmatpush1.bf16.msra.mxu0 %v243
  %322 = vmatprep.subr.bf16.mxu0 0
  %323 = vmatpush1.bf16.msra.mxu0 %v244
  %324 = vmatprep.subr.bf16.mxu0 0
  %325 = vmatpush1.bf16.msra.mxu0 %v245
  %326 = vmatprep.mubr.bf16.mxu0 %v95
  %327 = vmatmul.mubr.bf16.gmra.mrb[0].mxu0 %v94
  %v328 = vpop.f32.mrb[0].mxu0
  %v329 = vadd.f32 %v86, %v328
  %v330 = vpop.f32.mrb[0].mxu0
  %v331 = vpop.f32.mrb[0].mxu0
  %v332 = vpop.f32.mrb[0].mxu0
  %333 = vdwg.mxu0
  %334 = vmatprep.subr.bf16.mxu0 0
  %335 = vmatpush1.bf16.msra.mxu0 %v246
  %336 = vmatprep.subr.bf16.mxu0 0
  %337 = vmatpush1.bf16.msra.mxu0 %v247
  %338 = vmatprep.subr.bf16.mxu0 0
  %339 = vmatpush1.bf16.msra.mxu0 %v248
  %340 = vmatprep.subr.bf16.mxu0 0
  %341 = vmatpush1.bf16.msra.mxu0 %v249
  %342 = vmatprep.subr.bf16.mxu0 0
  %343 = vmatpush1.bf16.msra.mxu0 %v250
  %344 = vmatprep.subr.bf16.mxu0 0
  %345 = vmatpush1.bf16.msra.mxu0 %v251
  %346 = vmatprep.subr.bf16.mxu0 0
  %347 = vmatpush1.bf16.msra.mxu0 %v252
  %348 = vmatprep.subr.bf16.mxu0 0
  %349 = vmatpush1.bf16.msra.mxu0 %v253
  %350 = vmatprep.subr.bf16.mxu0 0
  %351 = vmatpush1.bf16.msra.mxu0 %v254
  %352 = vmatprep.subr.bf16.mxu0 0
  %353 = vmatpush1.bf16.msra.mxu0 %v255
  %354 = vmatprep.subr.bf16.mxu0 0
  %355 = vmatpush1.bf16.msra.mxu0 %v256
  %356 = vmatprep.subr.bf16.mxu0 0
  %357 = vmatpush1.bf16.msra.mxu0 %v257
  %358 = vmatprep.subr.bf16.mxu0 0
  %359 = vmatpush1.bf16.msra.mxu0 %v258
  %360 = vmatprep.subr.bf16.mxu0 0
  %361 = vmatpush1.bf16.msra.mxu0 %v259
  %362 = vmatprep.subr.bf16.mxu0 0
  %363 = vmatpush1.bf16.msra.mxu0 %v260
  %364 = vmatprep.subr.bf16.mxu0 0
  %365 = vmatpush1.bf16.msra.mxu0 %v261
  %366 = vmatprep.mubr.bf16.mxu0 %v97
  %367 = vmatmul.mubr.bf16.gmra.mrb[0].mxu0 %v96
  %v368 = vpop.f32.mrb[0].mxu0
  %v369 = vadd.f32 %v329, %v368
  %v370 = vpop.f32.mrb[0].mxu0
  %v371 = vpop.f32.mrb[0].mxu0
  %v372 = vpop.f32.mrb[0].mxu0
  %373 = vdwg.mxu0
  %v374 = vmax.f32 %v369, 0.0
  %v375 = vpack.c.bf16 %v374, %v374
  %376 = vst [vmem:[%s3] sm:$0xf] %v375
  // Predicated region
  $region14: #{mixer_forward.5} parent=0 // pred_check
    _
  $region15: #{mixer_forward.5} parent=0 // pred_check_branch
    %378 = sbr.rel (0) target = $region17
  $region16: #{mixer_forward.5} parent=0 // pred_region
    _
  $region17: #{mixer_forward.5} parent=0 // pred_fallthru
    _
  // Predicated region
  $region18: #{mixer_forward.5} parent=0 // pred_check
    _
  $region19: #{mixer_forward.5} parent=0 // pred_check_branch
    %380 = sbr.rel (0) target = $region21
  $region20: #{mixer_forward.5} parent=0 // pred_region
    _
  $region21: #{mixer_forward.5} parent=0 // pred_fallthru
    _

</llo_original>
